<compile_context>
chip_gen: v6e
topology: v6e:2x2x1
jax: 0.10.0
libtpu: 0.0.40
codegen_flags: <defaults>
</compile_context>

<pallas_src>
import functools

import jax
import jax.numpy as jnp
import numpy as np
from jax.experimental import pallas as pl
from jax.experimental.pallas import tpu as pltpu


# ----------------------------------------------------------------------------
# pltpu.roll convention probe (run once, eagerly, at decoder construction).
# We need "out[:, i] = x[:, i + k]"; the probe tells us whether pltpu.roll
# follows the np.roll convention (out[i] = in[i - shift]) on this build.
# ----------------------------------------------------------------------------
_ROLL_NP_CONVENTION = None


def _roll_np_convention():
    global _ROLL_NP_CONVENTION
    if _ROLL_NP_CONVENTION is None:
        def k(x_ref, o_ref):
            o_ref[...] = pltpu.roll(x_ref[...], 1, axis=1)
        try:
            x = jnp.tile(jnp.arange(128, dtype=jnp.float32)[None, :], (8, 1))
            out = pl.pallas_call(
                k, out_shape=jax.ShapeDtypeStruct((8, 128), jnp.float32))(x)
            _ROLL_NP_CONVENTION = bool(np.asarray(out)[0, 1] == 0.0)
        except Exception:
            _ROLL_NP_CONVENTION = True
    return _ROLL_NP_CONVENTION


def _shift_left(x, k, np_conv):
    """Circular shift of a 2-D array so that out[:, i] = x[:, i + k] (static k)."""
    m = x.shape[1]
    s = (m - k) % m if np_conv else (k % m)
    return pltpu.roll(x, s, axis=1)


def _vmem_capacity_bytes():
    try:
        return int(pltpu.get_tpu_info().vmem_capacity_bytes)
    except Exception:
        return 64 * 1024 * 1024  # conservative (v7x per-core VMEM)


# ----------------------------------------------------------------------------
# Kernel.  One (batch image, row tile) per grid step.
#   x_ref:     (1, Cin, m)        bf16   m = tile_rows * W (row-major lanes)
#   halo_ref:  (1, Cin, >=W)      bf16   first row of the next tile (tiled only)
#   w_ref:     (4, 4*Cout, Cin)   bf16   per-shift parity-blocked weight
#   shift_ref: (4*Cout, 128)      f32    conv bias + BN shift (lane-replicated)
#   colm_ref:  (1, m)             f32    0.0 where col == W-1 else 1.0
#   rowm_ref:  (1, m)             f32    0.0 on last W lanes (untiled only)
#   o_ref:     (1, 4*Cout, m)     bf16/f32 parity-blocked output (lane-dense)
# ----------------------------------------------------------------------------
def _deconv_kernel(*refs, W, activation, tiled, roll_np):
    if tiled:
        x_ref, halo_ref, w_ref, shift_ref, colm_ref, o_ref = refs
    else:
        x_ref, w_ref, shift_ref, colm_ref, rowm_ref, o_ref = refs

    x = x_ref[0]                                  # (Cin, m) bf16
    cin, m = x.shape
    xf = x.astype(jnp.float32)
    colm = colm_ref[...]                          # (1, m) f32

    if tiled:
        # Halo = first row of the next tile; zeroed on the last tile of the image.
        keep = jnp.where(pl.program_id(1) == pl.num_programs(1) - 1, 0.0, 1.0)
        halo = halo_ref[0, :, :W].astype(jnp.float32) * keep     # (Cin, W)
        x_ext = jnp.concatenate([xf, halo], axis=1)              # (Cin, m+W)
        xh = x_ext[:, W:]                                        # x[i+1, j]
        xw = _shift_left(xf, 1, roll_np) * colm                  # x[i, j+1]
        xhw = _shift_left(xh, 1, roll_np) * colm                 # x[i+1, j+1]
    elif m >= 128 and m % 128 == 0:
        # Whole plane, roll-based neighbour construction (no VMEM copy chain).
        rowm = rowm_ref[...]
        xh = _shift_left(xf, W, roll_np) * rowm
        xw = _shift_left(xf, 1, roll_np) * colm
        xhw = _shift_left(xh, 1, roll_np) * colm
    else:
        # Tiny plane fallback (lane dim not 128-aligned): zero-tail + slices.
        tail = jnp.zeros((cin, W + 1), jnp.float32)
        xp = jnp.concatenate([xf, tail], axis=1)
        xh = xp[:, W:W + m]
        xw = xp[:, 1:1 + m] * colm
        xhw = xp[:, W + 1:W + 1 + m] * colm

    # Four K=Cin MXU dots accumulated in f32 (no (4Cin, m) "xbig" materialized).
    y = jnp.dot(w_ref[0], x, preferred_element_type=jnp.float32)
    y = y + jnp.dot(w_ref[1], xh.astype(jnp.bfloat16),
                    preferred_element_type=jnp.float32)
    y = y + jnp.dot(w_ref[2], xw.astype(jnp.bfloat16),
                    preferred_element_type=jnp.float32)
    y = y + jnp.dot(w_ref[3], xhw.astype(jnp.bfloat16),
                    preferred_element_type=jnp.float32)
    y = y + shift_ref[...][:, :1]                 # fused conv bias + BN shift

    if activation == "leaky_relu":
        y = jnp.where(y >= 0.0, y, 0.01 * y)      # nn.LeakyReLU default slope
    else:
        y = jnp.tanh(y)
    o_ref[0] = y.astype(o_ref.dtype)


# ----------------------------------------------------------------------------
# Row-tile selection (generation aware via the VMEM budget).
# ----------------------------------------------------------------------------
def _choose_tile_rows(H, W, cin, cout, budget_bytes, max_tile_rows):
    halo_lanes = ((W + 127) // 128) * 128
    # Rough per-row VMEM footprint: double-buffered bf16 in/out blocks plus the
    # f32 in-kernel temporaries (xf/xh/xw/xhw + accumulator).
    per_row = W * (cin * (2 * 2 + 4 * 4) + 4 * cout * (2 * 2 + 4))

    def ok(t):
        return (H % t == 0 and (t * W) % 128 == 0 and (t * W) % halo_lanes == 0)

    if max_tile_rows is None:
        if per_row * H <= budget_bytes:
            return H                      # small plane: whole image per step
        cap = H - 1
    else:
        cap = min(max_tile_rows, H - 1)

    best = None
    for t in range(1, cap + 1):
        if ok(t) and per_row * t <= budget_bytes:
            best = t
    return best if best is not None else H


# ----------------------------------------------------------------------------
# One layer = ConvTranspose2d(k3,s2,p1,op1) [+ BN(eval)] + activation.
#   x_flat (B, Cin, H*W) bf16  ->  parity-blocked (B, 4*Cout, H*W)
# ----------------------------------------------------------------------------
def deconv_layer(x_flat, H, W, layer, *, out_dtype, vmem_limit, tile_budget,
                 max_tile_rows, roll_np):
    B, cin, M = x_flat.shape
    assert M == H * W
    cout = layer["cout"]
    activation = layer["activation"]
    w_stack = layer["w_stack"]          # (4, 4*cout, cin) bf16
    shift_rep = layer["shift_rep"]      # (4*cout, 128)    f32

    TR = _choose_tile_rows(H, W, cin, cout, tile_budget, max_tile_rows)
    tiled = TR < H
    m_t = TR * W

    # Precomputed right-edge mask (identical for every grid step).
    col = jnp.arange(m_t, dtype=jnp.int32) % W
    colm = (col != (W - 1)).astype(jnp.float32).reshape(1, m_t)

    out_bytes = 2 if out_dtype == jnp.bfloat16 else 4
    cost = pl.CostEstimate(
        flops=2 * B * M * (4 * cin) * (4 * cout),
        transcendentals=(B * M * 4 * cout) if activation == "tanh" else 0,
        bytes_accessed=B * M * (2 * cin + out_bytes * 4 * cout)
        + 2 * 16 * cin * cout + 4 * 4 * cout * 128,
    )

    kernel = functools.partial(_deconv_kernel, W=W, activation=activation,
                               tiled=tiled, roll_np=roll_np)

    if not tiled:
        rowm = (jnp.arange(M, dtype=jnp.int32) < (M - W)).astype(
            jnp.float32).reshape(1, M)
        grid = (B,)
        in_specs = [
            pl.BlockSpec((1, cin, M), lambda b: (b, 0, 0)),
            pl.BlockSpec((4, 4 * cout, cin), lambda b: (0, 0, 0)),
            pl.BlockSpec((4 * cout, 128), lambda b: (0, 0)),
            pl.BlockSpec((1, M), lambda b: (0, 0)),
            pl.BlockSpec((1, M), lambda b: (0, 0)),
        ]
        out_specs = pl.BlockSpec((1, 4 * cout, M), lambda b: (b, 0, 0))
        args = (x_flat, w_stack, shift_rep, colm, rowm)
        dims = ("parallel",)
    else:
        R = H // TR
        halo_lanes = ((W + 127) // 128) * 128
        bpt = m_t // halo_lanes            # halo blocks per row tile
        nhb = M // halo_lanes              # total halo blocks in the plane
        grid = (B, R)
        in_specs = [
            pl.BlockSpec((1, cin, m_t), lambda b, r: (b, 0, r)),
            # Halo: 128-lane-aligned window starting at the next tile's first row.
            pl.BlockSpec((1, cin, halo_lanes),
                         lambda b, r: (b, 0, jnp.minimum((r + 1) * bpt, nhb - 1))),
            pl.BlockSpec((4, 4 * cout, cin), lambda b, r: (0, 0, 0)),
            pl.BlockSpec((4 * cout, 128), lambda b, r: (0, 0)),
            pl.BlockSpec((1, m_t), lambda b, r: (0, 0)),
        ]
        out_specs = pl.BlockSpec((1, 4 * cout, m_t), lambda b, r: (b, 0, r))
        args = (x_flat, x_flat, w_stack, shift_rep, colm)
        dims = ("parallel", "parallel")

    return pl.pallas_call(
        kernel,
        out_shape=jax.ShapeDtypeStruct((B, 4 * cout, M), out_dtype),
        grid_spec=pltpu.PrefetchScalarGridSpec(
            num_scalar_prefetch=0, grid=grid,
            in_specs=in_specs, out_specs=out_specs),
        compiler_params=pltpu.CompilerParams(
            dimension_semantics=dims, vmem_limit_bytes=vmem_limit),
        cost_estimate=cost,
    )(*args)


# ----------------------------------------------------------------------------
# Parity-blocked weights from the PyTorch ConvTranspose2d layout [Cin,Cout,3,3].
# Row q = p*Cout + c with p = 2*a + b (output row/col parity); stack index s:
# 0 -> x[i,j], 1 -> x[i+1,j], 2 -> x[i,j+1], 3 -> x[i+1,j+1].
# ----------------------------------------------------------------------------
_PARITY_ENTRIES = [  # (shift s, parity p, kh, kw)
    (0, 0, 1, 1), (0, 1, 1, 2), (0, 2, 2, 1), (0, 3, 2, 2),
    (1, 2, 0, 1), (1, 3, 0, 2),
    (2, 1, 1, 0), (2, 3, 2, 0),
    (3, 3, 0, 0),
]


def build_w_stack(w_fold):
    cin, cout = w_fold.shape[0], w_fold.shape[1]
    w = jnp.zeros((4, 4 * cout, cin), jnp.float32)
    for s, p, kh, kw in _PARITY_ENTRIES:
        blk = jnp.transpose(w_fold[:, :, kh, kw]).astype(jnp.float32)  # (Cout, Cin)
        w = w.at[s, p * cout:(p + 1) * cout, :].set(blk)
    return w.astype(jnp.bfloat16)


# ----------------------------------------------------------------------------
# The full decoder (BatchNorm2d in eval mode, folded into scale/shift).
# ----------------------------------------------------------------------------
class Latent2ImgDecoderPallas:
    def __init__(self, hidden_width, key):
        self.roll_np = _roll_np_convention()
        vmem_cap = _vmem_capacity_bytes()
        self.vmem_limit = int(min(vmem_cap // 2, 64 * 1024 * 1024))
        self.tile_budget = self.vmem_limit // 4

        self.params = []
        eps = 1e-5
        for i in range(len(hidden_width) - 1):
            cin, cout = hidden_width[i], hidden_width[i + 1]
            key, k_w, k_b, k_g, k_bt = jax.random.split(key, 5)
            w_pt = jax.random.normal(k_w, (cin, cout, 3, 3), jnp.float32) / np.sqrt(cin * 9)
            bias = jax.random.normal(k_b, (cout,), jnp.float32) * 0.01
            gamma = 1.0 + 0.1 * jax.random.normal(k_g, (cout,), jnp.float32)
            beta = 0.1 * jax.random.normal(k_bt, (cout,), jnp.float32)
            run_mean = jnp.zeros((cout,), jnp.float32)
            run_var = jnp.ones((cout,), jnp.float32)
            scale_c = gamma / jnp.sqrt(run_var + eps)
            shift_c = beta + (bias - run_mean) * scale_c
            self.params.append(self._make_layer(w_pt, scale_c, shift_c, cout, "leaky_relu"))
        # final layer: ConvTranspose2d(hidden_width[-1] -> 1) + Tanh
        cin, cout = hidden_width[-1], 1
        key, k_w, k_b = jax.random.split(key, 3)
        w_pt = jax.random.normal(k_w, (cin, cout, 3, 3), jnp.float32) / np.sqrt(cin * 9)
        bias = jax.random.normal(k_b, (cout,), jnp.float32) * 0.01
        self.params.append(
            self._make_layer(w_pt, jnp.ones((cout,), jnp.float32), bias, cout, "tanh"))

    @staticmethod
    def _make_layer(w_pt, scale_c, shift_c, cout, activation):
        # Fold BN scale into the conv weight; round once to bf16 (MXU feed).
        w_fold_bf = (w_pt * scale_c[None, :, None, None]).astype(jnp.bfloat16)
        w_fold = w_fold_bf.astype(jnp.float32)            # for the reference path
        w_stack = build_w_stack(w_fold)                   # (4, 4Cout, Cin) bf16
        shift_rep = (jnp.tile(shift_c, 4)[:, None]
                     * jnp.ones((1, 128), jnp.float32))   # lane-dense DMA
        return dict(w_stack=w_stack, shift_rep=shift_rep, w_fold=w_fold,
                    shift_c=shift_c, cout=cout, activation=activation)

    def __call__(self, x_nchw, max_tile_rows=None):
        B, _, H, W = x_nchw.shape
        x = x_nchw.astype(jnp.bfloat16)                   # bf16 activations
        n = len(self.params)
        for idx, p in enumerate(self.params):
            cin = x.shape[1]
            cout = p["cout"]
            is_final = idx == n - 1
            x_flat = x.reshape(B, cin, H * W)             # free reshape (NCHW kept)
            out = deconv_layer(
                x_flat, H, W, p,
                out_dtype=jnp.float32 if is_final else jnp.bfloat16,
                vmem_limit=self.vmem_limit, tile_budget=self.tile_budget,
                max_tile_rows=max_tile_rows, roll_np=self.roll_np)
            # Parity interleave (XLA, now at bf16): (B,4Cout,HW) -> (B,Cout,2H,2W).
            # TODO(synk): fuse this interleave into the next layer's kernel.
            y = out.reshape(B, 2, 2, cout, H, W)
            y = jnp.transpose(y, (0, 3, 4, 1, 5, 2))
            x = y.reshape(B, cout, 2 * H, 2 * W)
            H, W = 2 * H, 2 * W
        return x                                          # (B, 1, 2^n*H, 2^n*W) f32


# ----------------------------------------------------------------------------
# Pure-JAX reference (lax dilated conv == transposed conv), bf16-rounded to
# match the kernel's operand rounding points.
# ----------------------------------------------------------------------------
def _ref_forward(x_nchw, decoder):
    x = jnp.transpose(x_nchw, (0, 2, 3, 1))               # NHWC
    for p in decoder.params:
        x = x.astype(jnp.bfloat16).astype(jnp.float32)
        k = jnp.transpose(p["w_fold"][:, :, ::-1, ::-1], (2, 3, 0, 1))  # HWIO, flipped
        y = jax.lax.conv_general_dilated(
            x, k, window_strides=(1, 1), padding=((1, 2), (1, 2)),
            lhs_dilation=(2, 2), dimension_numbers=("NHWC", "HWIO", "NHWC"))
        y = y + p["shift_c"][None, None, None, :]
        if p["activation"] == "leaky_relu":
            y = jnp.where(y >= 0.0, y, 0.01 * y)
        else:
            y = jnp.tanh(y)
        x = y
    return jnp.transpose(x, (0, 3, 1, 2))                  # NCHW


if __name__ == "__main__":
    key = jax.random.PRNGKey(0)
    hidden_width = [32, 16, 8]
    B, H, W = 2, 4, 8                                      # input spatial dims
    k_x, k_p = jax.random.split(key)
    x = jax.random.normal(k_x, (B, hidden_width[0], H, W), jnp.float32)  # NCHW

    decoder = Latent2ImgDecoderPallas(hidden_width, k_p)
    ref = jax.block_until_ready(_ref_forward(x, decoder))

    # 1) auto tiling (whole-plane blocks at these small shapes)
    out = jax.block_until_ready(jax.jit(decoder.__call__)(x))
    n_layers = len(hidden_width)
    assert out.shape == (B, 1, H * 2 ** n_layers, W * 2 ** n_layers), out.shape
    np.testing.assert_allclose(np.asarray(out), np.asarray(ref), rtol=2e-3, atol=2e-3)

    # 2) force the row-tiled (halo) path on the last layer to validate it too
    out_tiled = jax.block_until_ready(
        jax.jit(lambda v: decoder(v, max_tile_rows=4))(x))
    np.testing.assert_allclose(np.asarray(out_tiled), np.asarray(ref),
                               rtol=2e-3, atol=2e-3)

    print("KERNEL_OK")
</pallas_src>

<mosaic_0001>
module attributes {stable_mosaic.version = 11 : i64} {
  func.func @k(%arg0: memref<8x128xf32, #tpu.memory_space<vmem>>, %arg1: memref<8x128xf32, #tpu.memory_space<vmem>>) attributes {dimension_semantics = [], scalar_prefetch = 0 : i64, scratch_operands = 0 : i64, tpu.core_type = #tpu.core_type<tc>} {
    %c0 = arith.constant 0 : index
    %c0_0 = arith.constant 0 : index
    %0 = vector.load %arg0[%c0, %c0_0] : memref<8x128xf32, #tpu.memory_space<vmem>>, vector<8x128xf32>
    %c1_i32 = arith.constant 1 : i32
    %1 = tpu.dynamic_rotate %0 by %c1_i32 dim 1 : vector<8x128xf32>, i32 -> vector<8x128xf32>
    %c0_1 = arith.constant 0 : index
    %c0_2 = arith.constant 0 : index
    %2 = vector.load %arg1[%c0_1, %c0_2] : memref<8x128xf32, #tpu.memory_space<vmem>>, vector<8x128xf32>
    tpu.vector_store %arg1[%c0_1, %c0_2], %1 {strides = array<i32>} : memref<8x128xf32, #tpu.memory_space<vmem>>, vector<8x128xf32>,
    return
  }
}

module attributes {stable_mosaic.version = 11 : i64} {
  func.func @_deconv_kernel(%arg0: i32, %arg1: memref<1x32x32xbf16, #tpu.memory_space<vmem>>, %arg2: memref<4x64x32xbf16, #tpu.memory_space<vmem>>, %arg3: memref<64x128xf32, #tpu.memory_space<vmem>>, %arg4: memref<1x32xf32, #tpu.memory_space<vmem>>, %arg5: memref<1x32xf32, #tpu.memory_space<vmem>>, %arg6: memref<1x64x32xbf16, #tpu.memory_space<vmem>>) attributes {dimension_semantics = [#tpu.dimension_semantics<parallel>], iteration_bounds = array<i64: 2>, scalar_prefetch = 0 : i64, scratch_operands = 0 : i64, tpu.core_type = #tpu.core_type<tc>, window_params = [{transform_indices = @transform_0, window_bounds = array<i64: 1, 32, 32>}, {pipeline_mode = #tpu.pipeline_mode<synchronous>, transform_indices = @transform_1, window_bounds = array<i64: 4, 64, 32>}, {pipeline_mode = #tpu.pipeline_mode<synchronous>, transform_indices = @transform_2, window_bounds = array<i64: 64, 128>}, {pipeline_mode = #tpu.pipeline_mode<synchronous>, transform_indices = @transform_3, window_bounds = array<i64: 1, 32>}, {pipeline_mode = #tpu.pipeline_mode<synchronous>, transform_indices = @transform_4, window_bounds = array<i64: 1, 32>}, {transform_indices = @transform_5, window_bounds = array<i64: 1, 64, 32>}]} {
    %c0 = arith.constant 0 : index
    %c0_0 = arith.constant 0 : index
    %c0_1 = arith.constant 0 : index
    %0 = vector.load %arg1[%c0, %c0_0, %c0_1] : memref<1x32x32xbf16, #tpu.memory_space<vmem>>, vector<1x32x32xbf16>
    %1 = vector.shape_cast %0 : vector<1x32x32xbf16> to vector<32x32xbf16>
    %2 = arith.extf %1 : vector<32x32xbf16> to vector<32x32xf32>
    %c0_2 = arith.constant 0 : index
    %c0_3 = arith.constant 0 : index
    %3 = vector.load %arg4[%c0_2, %c0_3] : memref<1x32xf32, #tpu.memory_space<vmem>>, vector<1x32xf32>
    %cst = arith.constant 0.000000e+00 : f32
    %4 = vector.broadcast %cst : f32 to vector<32x9xf32>
    %5 = tpu.concatenate %2, %4 in 1 : vector<32x32xf32>, vector<32x9xf32> -> vector<32x41xf32>
    %6 = vector.extract_strided_slice %5 {offsets = [0, 8], sizes = [32, 32], strides = [1, 1]} : vector<32x41xf32> to vector<32x32xf32>
    %7 = vector.extract_strided_slice %5 {offsets = [0, 1], sizes = [32, 32], strides = [1, 1]} : vector<32x41xf32> to vector<32x32xf32>
    %8 = vector.broadcast %3 : vector<1x32xf32> to vector<32x32xf32>
    %9 = arith.mulf %7, %8 : vector<32x32xf32>
    %10 = vector.extract_strided_slice %5 {offsets = [0, 9], sizes = [32, 32], strides = [1, 1]} : vector<32x41xf32> to vector<32x32xf32>
    %11 = vector.broadcast %3 : vector<1x32xf32> to vector<32x32xf32>
    %12 = arith.mulf %10, %11 : vector<32x32xf32>
    %c0_4 = arith.constant 0 : index
    %c0_5 = arith.constant 0 : index
    %c0_6 = arith.constant 0 : index
    %13 = vector.load %arg2[%c0_4, %c0_5, %c0_6] : memref<4x64x32xbf16, #tpu.memory_space<vmem>>, vector<1x64x32xbf16>
    %14 = vector.shape_cast %13 : vector<1x64x32xbf16> to vector<64x32xbf16>
    %cst_7 = arith.constant dense<0.000000e+00> : vector<64x32xf32>
    %15 = tpu.matmul %14, %1, %cst_7 {dimension_numbers = #tpu.dot_dimension_numbers<[1], [0], [0], [1], [0, 0, 1, 1], [], []>} : vector<64x32xbf16>, vector<32x32xbf16>, vector<64x32xf32> -> vector<64x32xf32>
    %c1 = arith.constant 1 : index
    %c0_8 = arith.constant 0 : index
    %c0_9 = arith.constant 0 : index
    %16 = vector.load %arg2[%c1, %c0_8, %c0_9] : memref<4x64x32xbf16, #tpu.memory_space<vmem>>, vector<1x64x32xbf16>
    %17 = vector.shape_cast %16 : vector<1x64x32xbf16> to vector<64x32xbf16>
    %18 = arith.truncf %6 : vector<32x32xf32> to vector<32x32xbf16>
    %cst_10 = arith.constant dense<0.000000e+00> : vector<64x32xf32>
    %19 = tpu.matmul %17, %18, %cst_10 {dimension_numbers = #tpu.dot_dimension_numbers<[1], [0], [0], [1], [0, 0, 1, 1], [], []>} : vector<64x32xbf16>, vector<32x32xbf16>, vector<64x32xf32> -> vector<64x32xf32>
    %20 = arith.addf %15, %19 : vector<64x32xf32>
    %c2 = arith.constant 2 : index
    %c0_11 = arith.constant 0 : index
    %c0_12 = arith.constant 0 : index
    %21 = vector.load %arg2[%c2, %c0_11, %c0_12] : memref<4x64x32xbf16, #tpu.memory_space<vmem>>, vector<1x64x32xbf16>
    %22 = vector.shape_cast %21 : vector<1x64x32xbf16> to vector<64x32xbf16>
    %23 = arith.truncf %9 : vector<32x32xf32> to vector<32x32xbf16>
    %cst_13 = arith.constant dense<0.000000e+00> : vector<64x32xf32>
    %24 = tpu.matmul %22, %23, %cst_13 {dimension_numbers = #tpu.dot_dimension_numbers<[1], [0], [0], [1], [0, 0, 1, 1], [], []>} : vector<64x32xbf16>, vector<32x32xbf16>, vector<64x32xf32> -> vector<64x32xf32>
    %25 = arith.addf %20, %24 : vector<64x32xf32>
    %c3 = arith.constant 3 : index
    %c0_14 = arith.constant 0 : index
    %c0_15 = arith.constant 0 : index
    %26 = vector.load %arg2[%c3, %c0_14, %c0_15] : memref<4x64x32xbf16, #tpu.memory_space<vmem>>, vector<1x64x32xbf16>
    %27 = vector.shape_cast %26 : vector<1x64x32xbf16> to vector<64x32xbf16>
    %28 = arith.truncf %12 : vector<32x32xf32> to vector<32x32xbf16>
    %cst_16 = arith.constant dense<0.000000e+00> : vector<64x32xf32>
    %29 = tpu.matmul %27, %28, %cst_16 {dimension_numbers = #tpu.dot_dimension_numbers<[1], [0], [0], [1], [0, 0, 1, 1], [], []>} : vector<64x32xbf16>, vector<32x32xbf16>, vector<64x32xf32> -> vector<64x32xf32>
    %30 = arith.addf %25, %29 : vector<64x32xf32>
    %c0_17 = arith.constant 0 : index
    %c0_18 = arith.constant 0 : index
    %31 = vector.load %arg3[%c0_17, %c0_18] : memref<64x128xf32, #tpu.memory_space<vmem>>, vector<64x128xf32>
    %32 = vector.extract_strided_slice %31 {offsets = [0, 0], sizes = [64, 1], strides = [1, 1]} : vector<64x128xf32> to vector<64x1xf32>
    %33 = vector.broadcast %32 : vector<64x1xf32> to vector<64x32xf32>
    %34 = arith.addf %30, %33 : vector<64x32xf32>
    %cst_19 = arith.constant 0.000000e+00 : f32
    %35 = vector.broadcast %cst_19 : f32 to vector<64x32xf32>
    %36 = arith.cmpf oge, %34, %35 : vector<64x32xf32>
    %cst_20 = arith.constant 0.00999999977 : f32
    %37 = vector.broadcast %cst_20 : f32 to vector<64x32xf32>
    %38 = arith.mulf %37, %34 : vector<64x32xf32>
    %39 = arith.select %36, %34, %38 : vector<64x32xi1>, vector<64x32xf32>
    %40 = arith.truncf %39 : vector<64x32xf32> to vector<64x32xbf16>
    %c0_21 = arith.constant 0 : index
    %c0_22 = arith.constant 0 : index
    %c0_23 = arith.constant 0 : index
    %41 = vector.load %arg6[%c0_21, %c0_22, %c0_23] : memref<1x64x32xbf16, #tpu.memory_space<vmem>>, vector<1x64x32xbf16>
    %42 = vector.shape_cast %41 : vector<1x64x32xbf16> to vector<64x32xbf16>
    %43 = vector.shape_cast %40 : vector<64x32xbf16> to vector<1x64x32xbf16>
    tpu.vector_store %arg6[%c0_21, %c0_22, %c0_23], %43 {strides = array<i32>} : memref<1x64x32xbf16, #tpu.memory_space<vmem>>, vector<1x64x32xbf16>,
    return
  }
  func.func @transform_0(%arg0: i32) -> (i32, i32, i32) {
    %c0_i32 = arith.constant 0 : i32
    %c0_i32_0 = arith.constant 0 : i32
    %c0_i32_1 = arith.constant 0 : i32
    return %arg0, %c0_i32, %c0_i32_0 : i32, i32, i32
  }
  func.func @transform_1(%arg0: i32) -> (i32, i32, i32) {
    %c0_i32 = arith.constant 0 : i32
    %c0_i32_0 = arith.constant 0 : i32
    %c0_i32_1 = arith.constant 0 : i32
    %c0_i32_2 = arith.constant 0 : i32
    return %c0_i32, %c0_i32_0, %c0_i32_1 : i32, i32, i32
  }
  func.func @transform_2(%arg0: i32) -> (i32, i32) {
    %c0_i32 = arith.constant 0 : i32
    %c0_i32_0 = arith.constant 0 : i32
    %c0_i32_1 = arith.constant 0 : i32
    return %c0_i32, %c0_i32_0 : i32, i32
  }
  func.func @transform_3(%arg0: i32) -> (i32, i32) {
    %c0_i32 = arith.constant 0 : i32
    %c0_i32_0 = arith.constant 0 : i32
    %c0_i32_1 = arith.constant 0 : i32
    return %c0_i32, %c0_i32_0 : i32, i32
  }
  func.func @transform_4(%arg0: i32) -> (i32, i32) {
    %c0_i32 = arith.constant 0 : i32
    %c0_i32_0 = arith.constant 0 : i32
    %c0_i32_1 = arith.constant 0 : i32
    return %c0_i32, %c0_i32_0 : i32, i32
  }
  func.func @transform_5(%arg0: i32) -> (i32, i32, i32) {
    %c0_i32 = arith.constant 0 : i32
    %c0_i32_0 = arith.constant 0 : i32
    %c0_i32_1 = arith.constant 0 : i32
    return %arg0, %c0_i32, %c0_i32_0 : i32, i32, i32
  }
}

module attributes {stable_mosaic.version = 11 : i64} {
  func.func @_deconv_kernel(%arg0: i32, %arg1: memref<1x16x128xbf16, #tpu.memory_space<vmem>>, %arg2: memref<4x32x16xbf16, #tpu.memory_space<vmem>>, %arg3: memref<32x128xf32, #tpu.memory_space<vmem>>, %arg4: memref<1x128xf32, #tpu.memory_space<vmem>>, %arg5: memref<1x128xf32, #tpu.memory_space<vmem>>, %arg6: memref<1x32x128xbf16, #tpu.memory_space<vmem>>) attributes {dimension_semantics = [#tpu.dimension_semantics<parallel>], iteration_bounds = array<i64: 2>, scalar_prefetch = 0 : i64, scratch_operands = 0 : i64, tpu.core_type = #tpu.core_type<tc>, window_params = [{transform_indices = @transform_0, window_bounds = array<i64: 1, 16, 128>}, {pipeline_mode = #tpu.pipeline_mode<synchronous>, transform_indices = @transform_1, window_bounds = array<i64: 4, 32, 16>}, {pipeline_mode = #tpu.pipeline_mode<synchronous>, transform_indices = @transform_2, window_bounds = array<i64: 32, 128>}, {pipeline_mode = #tpu.pipeline_mode<synchronous>, transform_indices = @transform_3, window_bounds = array<i64: 1, 128>}, {pipeline_mode = #tpu.pipeline_mode<synchronous>, transform_indices = @transform_4, window_bounds = array<i64: 1, 128>}, {transform_indices = @transform_5, window_bounds = array<i64: 1, 32, 128>}]} {
    %c0 = arith.constant 0 : index
    %c0_0 = arith.constant 0 : index
    %c0_1 = arith.constant 0 : index
    %0 = vector.load %arg1[%c0, %c0_0, %c0_1] : memref<1x16x128xbf16, #tpu.memory_space<vmem>>, vector<1x16x128xbf16>
    %1 = vector.shape_cast %0 : vector<1x16x128xbf16> to vector<16x128xbf16>
    %2 = arith.extf %1 : vector<16x128xbf16> to vector<16x128xf32>
    %c0_2 = arith.constant 0 : index
    %c0_3 = arith.constant 0 : index
    %3 = vector.load %arg4[%c0_2, %c0_3] : memref<1x128xf32, #tpu.memory_space<vmem>>, vector<1x128xf32>
    %c0_4 = arith.constant 0 : index
    %c0_5 = arith.constant 0 : index
    %4 = vector.load %arg5[%c0_4, %c0_5] : memref<1x128xf32, #tpu.memory_space<vmem>>, vector<1x128xf32>
    %c112_i32 = arith.constant 112 : i32
    %5 = tpu.dynamic_rotate %2 by %c112_i32 dim 1 : vector<16x128xf32>, i32 -> vector<16x128xf32>
    %6 = vector.broadcast %4 : vector<1x128xf32> to vector<16x128xf32>
    %7 = arith.mulf %5, %6 : vector<16x128xf32>
    %c127_i32 = arith.constant 127 : i32
    %8 = tpu.dynamic_rotate %2 by %c127_i32 dim 1 : vector<16x128xf32>, i32 -> vector<16x128xf32>
    %9 = vector.broadcast %3 : vector<1x128xf32> to vector<16x128xf32>
    %10 = arith.mulf %8, %9 : vector<16x128xf32>
    %c127_i32_6 = arith.constant 127 : i32
    %11 = tpu.dynamic_rotate %7 by %c127_i32_6 dim 1 : vector<16x128xf32>, i32 -> vector<16x128xf32>
    %12 = vector.broadcast %3 : vector<1x128xf32> to vector<16x128xf32>
    %13 = arith.mulf %11, %12 : vector<16x128xf32>
    %c0_7 = arith.constant 0 : index
    %c0_8 = arith.constant 0 : index
    %c0_9 = arith.constant 0 : index
    %14 = vector.load %arg2[%c0_7, %c0_8, %c0_9] : memref<4x32x16xbf16, #tpu.memory_space<vmem>>, vector<1x32x16xbf16>
    %15 = vector.shape_cast %14 : vector<1x32x16xbf16> to vector<32x16xbf16>
    %cst = arith.constant dense<0.000000e+00> : vector<32x128xf32>
    %16 = tpu.matmul %15, %1, %cst {dimension_numbers = #tpu.dot_dimension_numbers<[1], [0], [0], [1], [0, 0, 1, 1], [], []>} : vector<32x16xbf16>, vector<16x128xbf16>, vector<32x128xf32> -> vector<32x128xf32>
    %c1 = arith.constant 1 : index
    %c0_10 = arith.constant 0 : index
    %c0_11 = arith.constant 0 : index
    %17 = vector.load %arg2[%c1, %c0_10, %c0_11] : memref<4x32x16xbf16, #tpu.memory_space<vmem>>, vector<1x32x16xbf16>
    %18 = vector.shape_cast %17 : vector<1x32x16xbf16> to vector<32x16xbf16>
    %19 = arith.truncf %7 : vector<16x128xf32> to vector<16x128xbf16>
    %cst_12 = arith.constant dense<0.000000e+00> : vector<32x128xf32>
    %20 = tpu.matmul %18, %19, %cst_12 {dimension_numbers = #tpu.dot_dimension_numbers<[1], [0], [0], [1], [0, 0, 1, 1], [], []>} : vector<32x16xbf16>, vector<16x128xbf16>, vector<32x128xf32> -> vector<32x128xf32>
    %21 = arith.addf %16, %20 : vector<32x128xf32>
    %c2 = arith.constant 2 : index
    %c0_13 = arith.constant 0 : index
    %c0_14 = arith.constant 0 : index
    %22 = vector.load %arg2[%c2, %c0_13, %c0_14] : memref<4x32x16xbf16, #tpu.memory_space<vmem>>, vector<1x32x16xbf16>
    %23 = vector.shape_cast %22 : vector<1x32x16xbf16> to vector<32x16xbf16>
    %24 = arith.truncf %10 : vector<16x128xf32> to vector<16x128xbf16>
    %cst_15 = arith.constant dense<0.000000e+00> : vector<32x128xf32>
    %25 = tpu.matmul %23, %24, %cst_15 {dimension_numbers = #tpu.dot_dimension_numbers<[1], [0], [0], [1], [0, 0, 1, 1], [], []>} : vector<32x16xbf16>, vector<16x128xbf16>, vector<32x128xf32> -> vector<32x128xf32>
    %26 = arith.addf %21, %25 : vector<32x128xf32>
    %c3 = arith.constant 3 : index
    %c0_16 = arith.constant 0 : index
    %c0_17 = arith.constant 0 : index
    %27 = vector.load %arg2[%c3, %c0_16, %c0_17] : memref<4x32x16xbf16, #tpu.memory_space<vmem>>, vector<1x32x16xbf16>
    %28 = vector.shape_cast %27 : vector<1x32x16xbf16> to vector<32x16xbf16>
    %29 = arith.truncf %13 : vector<16x128xf32> to vector<16x128xbf16>
    %cst_18 = arith.constant dense<0.000000e+00> : vector<32x128xf32>
    %30 = tpu.matmul %28, %29, %cst_18 {dimension_numbers = #tpu.dot_dimension_numbers<[1], [0], [0], [1], [0, 0, 1, 1], [], []>} : vector<32x16xbf16>, vector<16x128xbf16>, vector<32x128xf32> -> vector<32x128xf32>
    %31 = arith.addf %26, %30 : vector<32x128xf32>
    %c0_19 = arith.constant 0 : index
    %c0_20 = arith.constant 0 : index
    %32 = vector.load %arg3[%c0_19, %c0_20] : memref<32x128xf32, #tpu.memory_space<vmem>>, vector<32x128xf32>
    %33 = vector.extract_strided_slice %32 {offsets = [0, 0], sizes = [32, 1], strides = [1, 1]} : vector<32x128xf32> to vector<32x1xf32>
    %34 = vector.broadcast %33 : vector<32x1xf32> to vector<32x128xf32>
    %35 = arith.addf %31, %34 : vector<32x128xf32>
    %cst_21 = arith.constant 0.000000e+00 : f32
    %36 = vector.broadcast %cst_21 : f32 to vector<32x128xf32>
    %37 = arith.cmpf oge, %35, %36 : vector<32x128xf32>
    %cst_22 = arith.constant 0.00999999977 : f32
    %38 = vector.broadcast %cst_22 : f32 to vector<32x128xf32>
    %39 = arith.mulf %38, %35 : vector<32x128xf32>
    %40 = arith.select %37, %35, %39 : vector<32x128xi1>, vector<32x128xf32>
    %41 = arith.truncf %40 : vector<32x128xf32> to vector<32x128xbf16>
    %c0_23 = arith.constant 0 : index
    %c0_24 = arith.constant 0 : index
    %c0_25 = arith.constant 0 : index
    %42 = vector.load %arg6[%c0_23, %c0_24, %c0_25] : memref<1x32x128xbf16, #tpu.memory_space<vmem>>, vector<1x32x128xbf16>
    %43 = vector.shape_cast %42 : vector<1x32x128xbf16> to vector<32x128xbf16>
    %44 = vector.shape_cast %41 : vector<32x128xbf16> to vector<1x32x128xbf16>
    tpu.vector_store %arg6[%c0_23, %c0_24, %c0_25], %44 {strides = array<i32>} : memref<1x32x128xbf16, #tpu.memory_space<vmem>>, vector<1x32x128xbf16>,
    return
  }
  func.func @transform_0(%arg0: i32) -> (i32, i32, i32) {
    %c0_i32 = arith.constant 0 : i32
    %c0_i32_0 = arith.constant 0 : i32
    %c0_i32_1 = arith.constant 0 : i32
    return %arg0, %c0_i32, %c0_i32_0 : i32, i32, i32
  }
  func.func @transform_1(%arg0: i32) -> (i32, i32, i32) {
    %c0_i32 = arith.constant 0 : i32
    %c0_i32_0 = arith.constant 0 : i32
    %c0_i32_1 = arith.constant 0 : i32
    %c0_i32_2 = arith.constant 0 : i32
    return %c0_i32, %c0_i32_0, %c0_i32_1 : i32, i32, i32
  }
  func.func @transform_2(%arg0: i32) -> (i32, i32) {
    %c0_i32 = arith.constant 0 : i32
    %c0_i32_0 = arith.constant 0 : i32
    %c0_i32_1 = arith.constant 0 : i32
    return %c0_i32, %c0_i32_0 : i32, i32
  }
  func.func @transform_3(%arg0: i32) -> (i32, i32) {
    %c0_i32 = arith.constant 0 : i32
    %c0_i32_0 = arith.constant 0 : i32
    %c0_i32_1 = arith.constant 0 : i32
    return %c0_i32, %c0_i32_0 : i32, i32
  }
  func.func @transform_4(%arg0: i32) -> (i32, i32) {
    %c0_i32 = arith.constant 0 : i32
    %c0_i32_0 = arith.constant 0 : i32
    %c0_i32_1 = arith.constant 0 : i32
    return %c0_i32, %c0_i32_0 : i32, i32
  }
  func.func @transform_5(%arg0: i32) -> (i32, i32, i32) {
    %c0_i32 = arith.constant 0 : i32
    %c0_i32_0 = arith.constant 0 : i32
    %c0_i32_1 = arith.constant 0 : i32
    return %arg0, %c0_i32, %c0_i32_0 : i32, i32, i32
  }
}

module attributes {stable_mosaic.version = 11 : i64} {
  func.func @_deconv_kernel(%arg0: i32, %arg1: memref<1x8x512xbf16, #tpu.memory_space<vmem>>, %arg2: memref<4x4x8xbf16, #tpu.memory_space<vmem>>, %arg3: memref<4x128xf32, #tpu.memory_space<vmem>>, %arg4: memref<1x512xf32, #tpu.memory_space<vmem>>, %arg5: memref<1x512xf32, #tpu.memory_space<vmem>>, %arg6: memref<1x4x512xf32, #tpu.memory_space<vmem>>) attributes {dimension_semantics = [#tpu.dimension_semantics<parallel>], iteration_bounds = array<i64: 2>, scalar_prefetch = 0 : i64, scratch_operands = 0 : i64, tpu.core_type = #tpu.core_type<tc>, window_params = [{transform_indices = @transform_0, window_bounds = array<i64: 1, 8, 512>}, {pipeline_mode = #tpu.pipeline_mode<synchronous>, transform_indices = @transform_1, window_bounds = array<i64: 4, 4, 8>}, {pipeline_mode = #tpu.pipeline_mode<synchronous>, transform_indices = @transform_2, window_bounds = array<i64: 4, 128>}, {pipeline_mode = #tpu.pipeline_mode<synchronous>, transform_indices = @transform_3, window_bounds = array<i64: 1, 512>}, {pipeline_mode = #tpu.pipeline_mode<synchronous>, transform_indices = @transform_4, window_bounds = array<i64: 1, 512>}, {transform_indices = @transform_5, window_bounds = array<i64: 1, 4, 512>}]} {
    %c0 = arith.constant 0 : index
    %c0_0 = arith.constant 0 : index
    %c0_1 = arith.constant 0 : index
    %0 = vector.load %arg1[%c0, %c0_0, %c0_1] : memref<1x8x512xbf16, #tpu.memory_space<vmem>>, vector<1x8x512xbf16>
    %1 = vector.shape_cast %0 : vector<1x8x512xbf16> to vector<8x512xbf16>
    %2 = arith.extf %1 : vector<8x512xbf16> to vector<8x512xf32>
    %c0_2 = arith.constant 0 : index
    %c0_3 = arith.constant 0 : index
    %3 = vector.load %arg4[%c0_2, %c0_3] : memref<1x512xf32, #tpu.memory_space<vmem>>, vector<1x512xf32>
    %c0_4 = arith.constant 0 : index
    %c0_5 = arith.constant 0 : index
    %4 = vector.load %arg5[%c0_4, %c0_5] : memref<1x512xf32, #tpu.memory_space<vmem>>, vector<1x512xf32>
    %c480_i32 = arith.constant 480 : i32
    %5 = tpu.dynamic_rotate %2 by %c480_i32 dim 1 : vector<8x512xf32>, i32 -> vector<8x512xf32>
    %6 = vector.broadcast %4 : vector<1x512xf32> to vector<8x512xf32>
    %7 = arith.mulf %5, %6 : vector<8x512xf32>
    %c511_i32 = arith.constant 511 : i32
    %8 = tpu.dynamic_rotate %2 by %c511_i32 dim 1 : vector<8x512xf32>, i32 -> vector<8x512xf32>
    %9 = vector.broadcast %3 : vector<1x512xf32> to vector<8x512xf32>
    %10 = arith.mulf %8, %9 : vector<8x512xf32>
    %c511_i32_6 = arith.constant 511 : i32
    %11 = tpu.dynamic_rotate %7 by %c511_i32_6 dim 1 : vector<8x512xf32>, i32 -> vector<8x512xf32>
    %12 = vector.broadcast %3 : vector<1x512xf32> to vector<8x512xf32>
    %13 = arith.mulf %11, %12 : vector<8x512xf32>
    %c0_7 = arith.constant 0 : index
    %c0_8 = arith.constant 0 : index
    %c0_9 = arith.constant 0 : index
    %14 = vector.load %arg2[%c0_7, %c0_8, %c0_9] : memref<4x4x8xbf16, #tpu.memory_space<vmem>>, vector<1x4x8xbf16>
    %15 = vector.shape_cast %14 : vector<1x4x8xbf16> to vector<4x8xbf16>
    %cst = arith.constant dense<0.000000e+00> : vector<4x512xf32>
    %16 = tpu.matmul %15, %1, %cst {dimension_numbers = #tpu.dot_dimension_numbers<[1], [0], [0], [1], [0, 0, 1, 1], [], []>} : vector<4x8xbf16>, vector<8x512xbf16>, vector<4x512xf32> -> vector<4x512xf32>
    %c1 = arith.constant 1 : index
    %c0_10 = arith.constant 0 : index
    %c0_11 = arith.constant 0 : index
    %17 = vector.load %arg2[%c1, %c0_10, %c0_11] : memref<4x4x8xbf16, #tpu.memory_space<vmem>>, vector<1x4x8xbf16>
    %18 = vector.shape_cast %17 : vector<1x4x8xbf16> to vector<4x8xbf16>
    %19 = arith.truncf %7 : vector<8x512xf32> to vector<8x512xbf16>
    %cst_12 = arith.constant dense<0.000000e+00> : vector<4x512xf32>
    %20 = tpu.matmul %18, %19, %cst_12 {dimension_numbers = #tpu.dot_dimension_numbers<[1], [0], [0], [1], [0, 0, 1, 1], [], []>} : vector<4x8xbf16>, vector<8x512xbf16>, vector<4x512xf32> -> vector<4x512xf32>
    %21 = arith.addf %16, %20 : vector<4x512xf32>
    %c2 = arith.constant 2 : index
    %c0_13 = arith.constant 0 : index
    %c0_14 = arith.constant 0 : index
    %22 = vector.load %arg2[%c2, %c0_13, %c0_14] : memref<4x4x8xbf16, #tpu.memory_space<vmem>>, vector<1x4x8xbf16>
    %23 = vector.shape_cast %22 : vector<1x4x8xbf16> to vector<4x8xbf16>
    %24 = arith.truncf %10 : vector<8x512xf32> to vector<8x512xbf16>
    %cst_15 = arith.constant dense<0.000000e+00> : vector<4x512xf32>
    %25 = tpu.matmul %23, %24, %cst_15 {dimension_numbers = #tpu.dot_dimension_numbers<[1], [0], [0], [1], [0, 0, 1, 1], [], []>} : vector<4x8xbf16>, vector<8x512xbf16>, vector<4x512xf32> -> vector<4x512xf32>
    %26 = arith.addf %21, %25 : vector<4x512xf32>
    %c3 = arith.constant 3 : index
    %c0_16 = arith.constant 0 : index
    %c0_17 = arith.constant 0 : index
    %27 = vector.load %arg2[%c3, %c0_16, %c0_17] : memref<4x4x8xbf16, #tpu.memory_space<vmem>>, vector<1x4x8xbf16>
    %28 = vector.shape_cast %27 : vector<1x4x8xbf16> to vector<4x8xbf16>
    %29 = arith.truncf %13 : vector<8x512xf32> to vector<8x512xbf16>
    %cst_18 = arith.constant dense<0.000000e+00> : vector<4x512xf32>
    %30 = tpu.matmul %28, %29, %cst_18 {dimension_numbers = #tpu.dot_dimension_numbers<[1], [0], [0], [1], [0, 0, 1, 1], [], []>} : vector<4x8xbf16>, vector<8x512xbf16>, vector<4x512xf32> -> vector<4x512xf32>
    %31 = arith.addf %26, %30 : vector<4x512xf32>
    %c0_19 = arith.constant 0 : index
    %c0_20 = arith.constant 0 : index
    %32 = vector.load %arg3[%c0_19, %c0_20] : memref<4x128xf32, #tpu.memory_space<vmem>>, vector<4x128xf32>
    %33 = vector.extract_strided_slice %32 {offsets = [0, 0], sizes = [4, 1], strides = [1, 1]} : vector<4x128xf32> to vector<4x1xf32>
    %34 = vector.broadcast %33 : vector<4x1xf32> to vector<4x512xf32>
    %35 = arith.addf %31, %34 : vector<4x512xf32>
    %36 = math.tanh %35 : vector<4x512xf32>
    %c0_21 = arith.constant 0 : index
    %c0_22 = arith.constant 0 : index
    %c0_23 = arith.constant 0 : index
    %37 = vector.load %arg6[%c0_21, %c0_22, %c0_23] : memref<1x4x512xf32, #tpu.memory_space<vmem>>, vector<1x4x512xf32>
    %38 = vector.shape_cast %37 : vector<1x4x512xf32> to vector<4x512xf32>
    %39 = vector.shape_cast %36 : vector<4x512xf32> to vector<1x4x512xf32>
    tpu.vector_store %arg6[%c0_21, %c0_22, %c0_23], %39 {strides = array<i32>} : memref<1x4x512xf32, #tpu.memory_space<vmem>>, vector<1x4x512xf32>,
    return
  }
  func.func @transform_0(%arg0: i32) -> (i32, i32, i32) {
    %c0_i32 = arith.constant 0 : i32
    %c0_i32_0 = arith.constant 0 : i32
    %c0_i32_1 = arith.constant 0 : i32
    return %arg0, %c0_i32, %c0_i32_0 : i32, i32, i32
  }
  func.func @transform_1(%arg0: i32) -> (i32, i32, i32) {
    %c0_i32 = arith.constant 0 : i32
    %c0_i32_0 = arith.constant 0 : i32
    %c0_i32_1 = arith.constant 0 : i32
    %c0_i32_2 = arith.constant 0 : i32
    return %c0_i32, %c0_i32_0, %c0_i32_1 : i32, i32, i32
  }
  func.func @transform_2(%arg0: i32) -> (i32, i32) {
    %c0_i32 = arith.constant 0 : i32
    %c0_i32_0 = arith.constant 0 : i32
    %c0_i32_1 = arith.constant 0 : i32
    return %c0_i32, %c0_i32_0 : i32, i32
  }
  func.func @transform_3(%arg0: i32) -> (i32, i32) {
    %c0_i32 = arith.constant 0 : i32
    %c0_i32_0 = arith.constant 0 : i32
    %c0_i32_1 = arith.constant 0 : i32
    return %c0_i32, %c0_i32_0 : i32, i32
  }
  func.func @transform_4(%arg0: i32) -> (i32, i32) {
    %c0_i32 = arith.constant 0 : i32
    %c0_i32_0 = arith.constant 0 : i32
    %c0_i32_1 = arith.constant 0 : i32
    return %c0_i32, %c0_i32_0 : i32, i32
  }
  func.func @transform_5(%arg0: i32) -> (i32, i32, i32) {
    %c0_i32 = arith.constant 0 : i32
    %c0_i32_0 = arith.constant 0 : i32
    %c0_i32_1 = arith.constant 0 : i32
    return %arg0, %c0_i32, %c0_i32_0 : i32, i32, i32
  }
}

</mosaic_0001>

<llo_original>
// kernel: tpu_custom_call.1
$region0: #{tpu_custom_call.1}
  #allocation0 [shape = 'u32[]', space=smem, size = 0x4, offset = 0x4, fixed_abs, tag = 'smem constant byte address 0x4 - core index']
  #allocation1 [shape = 'u32[144,128]{1,0:T(1,128)}', space=vmem, size = 0x12000, scoped, tag = 'internal scratch']
  %s0 = inlined_call_operand.hbm [shape: f32[8,128], index: 0, kind: input, shape index: {}]
  %s1 = inlined_call_operand.hbm [shape: f32[8,128], index: 1, kind: output, shape index: {}]
  %s2 = sld [smem:[#allocation0]]
  $region18: #{tpu_custom_call.1} parent=0
    _
  %s4 = ssub.s32 1, %s2
  %s5 = scalar_select 0, %s4, %s2
  $region1: #{tpu_custom_call.1} parent=0
    #allocation2 [shape = 'u8[4096]{0}', space=vmem, size = 0x1000, scoped, tag = 'input window, operand 0, single buffered']
    #allocation3 [shape = 's32[1]{0}', space=sflag, size = 0x4, scoped, tag = 'scoped memory for tpu_custom_call.1']
    #allocation4 [shape = 's32[1]{0}', space=sflag, size = 0x4, scoped, tag = 'scoped memory for tpu_custom_call.1']
    #allocation5 [shape = 'u8[4096]{0}', space=vmem, size = 0x1000, scoped, tag = 'output window, operand 0, single buffered']
    %6 = vsyncpa [#allocation3], 0
    %7 = vsyncpa [#allocation4], 0
    // Predicated region
    $region2: #{tpu_custom_call.1} parent=1 // pred_check
      _
    $region3: #{tpu_custom_call.1} parent=1 // pred_check_branch
      %9 = sbr.rel (0) target = $region5
    $region4: #{tpu_custom_call.1} parent=1 // pred_region
      %s11 = ssub.s32 128, 128
      %12 = vsyncadd [#allocation3], %s11
      %s14 = sshll.u32 [#allocation2], 4
      %s15 = int_to_ptr.vmem [resolvable:$true] %s14
      %17 = dma.hbm_to_vmem [thread:$0]  %s0, 128, %s15, [#allocation3]
    $region5: #{tpu_custom_call.1} parent=1 // pred_fallthru
      _
    // Predicated region
    $region6: #{tpu_custom_call.1} parent=1 // pred_check
      _
    $region7: #{tpu_custom_call.1} parent=1 // pred_check_branch
      %19 = sbr.rel (0) target = $region9
    $region8: #{tpu_custom_call.1} parent=1 // pred_region
      %20 = dma.done [#allocation3], 128
    $region9: #{tpu_custom_call.1} parent=1 // pred_fallthru
      _
    %v21 = vld [vmem:[#allocation2] sm:$0xff]
    %22 = vrot.lane.b32.xlu0 %v21, 1
    %v23 = vpop.permute.xlu0 %22
    %24 = vst [vmem:[#allocation5] sm:$0xff] %v23
    // Predicated region
    $region10: #{tpu_custom_call.1} parent=1 // pred_check
      _
    $region11: #{tpu_custom_call.1} parent=1 // pred_check_branch
      %26 = sbr.rel (0) target = $region13
    $region12: #{tpu_custom_call.1} parent=1 // pred_region
      %s28 = ssub.s32 128, 128
      %29 = vsyncadd [#allocation4], %s28
      %s31 = sshll.u32 [#allocation5], 4
      %s32 = int_to_ptr.vmem [resolvable:$true] %s31
      %34 = dma.vmem_to_hbm [thread:$0]  %s32, 128, %s1, [#allocation4]
    $region13: #{tpu_custom_call.1} parent=1 // pred_fallthru
      _
    // Predicated region
    $region14: #{tpu_custom_call.1} parent=1 // pred_check
      _
    $region15: #{tpu_custom_call.1} parent=1 // pred_check_branch
      %36 = sbr.rel (0) target = $region17
    $region16: #{tpu_custom_call.1} parent=1 // pred_region
      %37 = dma.done [#allocation4], 128
    $region17: #{tpu_custom_call.1} parent=1 // pred_fallthru
      _
    %38 = vsyncpa [#allocation3], 1
    %39 = vsyncpa [#allocation4], 1

// kernel: a_call__.3
$region0: #{a_call__.3}
  #allocation0 [shape = 'u32[]', space=smem, size = 0x4, offset = 0x4, fixed_abs, tag = 'smem constant byte address 0x4 - core index']
  #allocation1 [shape = 'u32[144,128]{1,0:T(1,128)}', space=vmem, size = 0x12000, scoped, tag = 'internal scratch']
  %s0 = inlined_call_operand.vmem [shape: bf16[2,32,32], index: 0, kind: input, shape index: {}]
  %s1 = inlined_call_operand.vmem [shape: bf16[4,64,32], index: 1, kind: input, shape index: {}]
  %s2 = inlined_call_operand.vmem [shape: f32[64,128], index: 2, kind: input, shape index: {}]
  %s3 = inlined_call_operand.vmem [shape: f32[1,32], index: 3, kind: input, shape index: {}]
  %s4 = inlined_call_operand.vmem [shape: f32[1,32], index: 4, kind: input, shape index: {}]
  %s5 = inlined_call_operand.vmem [shape: bf16[2,64,32], index: 5, kind: output, shape index: {}]
  %s6 = sld [smem:[#allocation0]]
  $region53: #{a_call__.3} parent=0
    _
  %s8 = ssub.s32 1, %s6
  %s9 = scalar_select 0, %s8, %s6
  loop: start=0, step=1, limit=4
  $region2: #{a_call__.3} parent=0 // loop_pre_header
    _
  $region3: #{a_call__.3} parent=0 // loop_header
    %s11 = sphi 0, %s15
    %p12 = scmp.ge.s32.totalorder %s11, 4
    %s21 = sphi 0, %s23
    %s24 = sphi 0, %s21
    %s25 = sphi 0, %s24
    %s41 = sphi 0, %s25
    %s45 = sphi 0, %s45
    %s47 = sphi 0, %s45
    %s48 = sphi 0, %s47
    %s62 = sphi 0, %s48
    %s66 = sphi 0, %s66
    %s68 = sphi 0, %s66
    %s69 = sphi 0, %s68
    %s83 = sphi 0, %s69
    %s87 = sphi 0, %s87
    %s89 = sphi 0, %s87
    %s90 = sphi 0, %s89
    %s104 = sphi 0, %s90
    %s108 = sphi 0, %s108
    %s110 = sphi 0, %s108
    %s111 = sphi 0, %s110
    %s125 = sphi 0, %s111
    %s131 = sphi 0, %s133
    %s134 = sphi 0, %s131
    %s135 = sphi 0, %s134
    %s151 = sphi 0, %s135
  $region4: #{a_call__.3} parent=0 // loop_header_branch
    %14 = sbr.rel (%p12) target = $region8
  $region5: #{a_call__.3} parent=0 // loop_body
    %s16 = ssub.s32 %s11, 1
    %s17 = ssub.s32 %s11, 2
    %s18 = sadd.s32 %s11, 1
    %s19 = ssub.s32 %s11, %s18
    %p20 = scmp.eq.s32.totalorder %s19, 0
    %s22 = sadd.s32 %s21, 1
    %s23 = scalar_select %p20, %s21, %s22
    %p26 = pneg %p20
    %p27 = scmp.eq.s32.totalorder %s11, 1
    %p28 = por %p26, %p27
    %p29 = scmp.ne.s32.totalorder %s21, %s24
    %p30 = scmp.eq.s32.totalorder %s11, 0
    %p31 = por %p29, %p30
    %p32 = scmp.ne.s32.totalorder %s21, %s24
    %p33 = scmp.eq.s32.totalorder %s16, 1
    %p34 = por %p32, %p33
    %p35 = scmp.ne.s32.totalorder %s24, %s25
    %p36 = scmp.eq.s32.totalorder %s16, 0
    %p37 = por %p35, %p36
    %p38 = scmp.ne.s32.totalorder %s24, %s25
    %p39 = scmp.eq.s32.totalorder %s17, 1
    %p40 = por %p38, %p39
    %p42 = scmp.ne.s32.totalorder %s25, %s41
    %p43 = scmp.eq.s32.totalorder %s17, 0
    %p44 = por %p42, %p43
    %s46 = sadd.s32 %s45, 1
    %p49 = scmp.eq.s32.totalorder %s11, 1
    %p50 = scmp.ne.s32.totalorder %s45, %s47
    %p51 = scmp.eq.s32.totalorder %s11, 0
    %p52 = por %p50, %p51
    %p53 = scmp.ne.s32.totalorder %s45, %s47
    %p54 = scmp.eq.s32.totalorder %s16, 1
    %p55 = por %p53, %p54
    %p56 = scmp.ne.s32.totalorder %s47, %s48
    %p57 = scmp.eq.s32.totalorder %s16, 0
    %p58 = por %p56, %p57
    %p59 = scmp.ne.s32.totalorder %s47, %s48
    %p60 = scmp.eq.s32.totalorder %s17, 1
    %p61 = por %p59, %p60
    %p63 = scmp.ne.s32.totalorder %s48, %s62
    %p64 = scmp.eq.s32.totalorder %s17, 0
    %p65 = por %p63, %p64
    %s67 = sadd.s32 %s66, 1
    %p70 = scmp.eq.s32.totalorder %s11, 1
    %p71 = scmp.ne.s32.totalorder %s66, %s68
    %p72 = scmp.eq.s32.totalorder %s11, 0
    %p73 = por %p71, %p72
    %p74 = scmp.ne.s32.totalorder %s66, %s68
    %p75 = scmp.eq.s32.totalorder %s16, 1
    %p76 = por %p74, %p75
    %p77 = scmp.ne.s32.totalorder %s68, %s69
    %p78 = scmp.eq.s32.totalorder %s16, 0
    %p79 = por %p77, %p78
    %p80 = scmp.ne.s32.totalorder %s68, %s69
    %p81 = scmp.eq.s32.totalorder %s17, 1
    %p82 = por %p80, %p81
    %p84 = scmp.ne.s32.totalorder %s69, %s83
    %p85 = scmp.eq.s32.totalorder %s17, 0
    %p86 = por %p84, %p85
    %s88 = sadd.s32 %s87, 1
    %p91 = scmp.eq.s32.totalorder %s11, 1
    %p92 = scmp.ne.s32.totalorder %s87, %s89
    %p93 = scmp.eq.s32.totalorder %s11, 0
    %p94 = por %p92, %p93
    %p95 = scmp.ne.s32.totalorder %s87, %s89
    %p96 = scmp.eq.s32.totalorder %s16, 1
    %p97 = por %p95, %p96
    %p98 = scmp.ne.s32.totalorder %s89, %s90
    %p99 = scmp.eq.s32.totalorder %s16, 0
    %p100 = por %p98, %p99
    %p101 = scmp.ne.s32.totalorder %s89, %s90
    %p102 = scmp.eq.s32.totalorder %s17, 1
    %p103 = por %p101, %p102
    %p105 = scmp.ne.s32.totalorder %s90, %s104
    %p106 = scmp.eq.s32.totalorder %s17, 0
    %p107 = por %p105, %p106
    %s109 = sadd.s32 %s108, 1
    %p112 = scmp.eq.s32.totalorder %s11, 1
    %p113 = scmp.ne.s32.totalorder %s108, %s110
    %p114 = scmp.eq.s32.totalorder %s11, 0
    %p115 = por %p113, %p114
    %p116 = scmp.ne.s32.totalorder %s108, %s110
    %p117 = scmp.eq.s32.totalorder %s16, 1
    %p118 = por %p116, %p117
    %p119 = scmp.ne.s32.totalorder %s110, %s111
    %p120 = scmp.eq.s32.totalorder %s16, 0
    %p121 = por %p119, %p120
    %p122 = scmp.ne.s32.totalorder %s110, %s111
    %p123 = scmp.eq.s32.totalorder %s17, 1
    %p124 = por %p122, %p123
    %p126 = scmp.ne.s32.totalorder %s111, %s125
    %p127 = scmp.eq.s32.totalorder %s17, 0
    %p128 = por %p126, %p127
    %s129 = ssub.s32 %s11, %s18
    %p130 = scmp.eq.s32.totalorder %s129, 0
    %s132 = sadd.s32 %s131, 1
    %s133 = scalar_select %p130, %s131, %s132
    %p136 = pneg %p130
    %p137 = scmp.eq.s32.totalorder %s11, 1
    %p138 = por %p136, %p137
    %p139 = scmp.ne.s32.totalorder %s131, %s134
    %p140 = scmp.eq.s32.totalorder %s11, 0
    %p141 = por %p139, %p140
    %p142 = scmp.ne.s32.totalorder %s131, %s134
    %p143 = scmp.eq.s32.totalorder %s16, 1
    %p144 = por %p142, %p143
    %p145 = scmp.ne.s32.totalorder %s134, %s135
    %p146 = scmp.eq.s32.totalorder %s16, 0
    %p147 = por %p145, %p146
    %p148 = scmp.ne.s32.totalorder %s134, %s135
    %p149 = scmp.eq.s32.totalorder %s17, 1
    %p150 = por %p148, %p149
    %p152 = scmp.ne.s32.totalorder %s135, %s151
    %p153 = scmp.eq.s32.totalorder %s17, 0
    %p154 = por %p152, %p153
    %p155 = scmp.le.s32.totalorder 1, %s11
    %p156 = scmp.lt.s32.totalorder %s11, 3
    %p157 = pnand %p155, %p156
    %p158 = pneg %p157
    // Predicated region
    $region9: #{a_call__.3} parent=5 // pred_check
      _
    $region10: #{a_call__.3} parent=5 // pred_check_branch
      %160 = sbr.rel (%p157) target = $region12
    $region11: #{a_call__.3} parent=5 // pred_region
      %s161 = ssub.s32 %s11, 1
      // Predicated region
      $region13: #{a_call__.3} parent=11 // pred_check
        %p162 = pneg %p58
      $region14: #{a_call__.3} parent=11 // pred_check_branch
        %164 = sbr.rel (%p162) target = $region16
      $region15: #{a_call__.3} parent=11 // pred_region
        _
      $region16: #{a_call__.3} parent=11 // pred_fallthru
        _
      // Predicated region
      $region17: #{a_call__.3} parent=11 // pred_check
        %p165 = pneg %p79
      $region18: #{a_call__.3} parent=11 // pred_check_branch
        %167 = sbr.rel (%p165) target = $region20
      $region19: #{a_call__.3} parent=11 // pred_region
        _
      $region20: #{a_call__.3} parent=11 // pred_fallthru
        _
      // Predicated region
      $region21: #{a_call__.3} parent=11 // pred_check
        %p168 = pneg %p100
      $region22: #{a_call__.3} parent=11 // pred_check_branch
        %170 = sbr.rel (%p168) target = $region24
      $region23: #{a_call__.3} parent=11 // pred_region
        _
      $region24: #{a_call__.3} parent=11 // pred_fallthru
        _
      // Predicated region
      $region25: #{a_call__.3} parent=11 // pred_check
        %p171 = pneg %p121
      $region26: #{a_call__.3} parent=11 // pred_check_branch
        %173 = sbr.rel (%p171) target = $region28
      $region27: #{a_call__.3} parent=11 // pred_region
        _
      $region28: #{a_call__.3} parent=11 // pred_fallthru
        _
    $region12: #{a_call__.3} parent=5 // pred_fallthru
      _
    %p174 = scmp.lt.s32.totalorder %s11, 2
    // Predicated region
    $region29: #{a_call__.3} parent=5 // pred_check
      %p175 = pneg %p174
    $region30: #{a_call__.3} parent=5 // pred_check_branch
      %177 = sbr.rel (%p175) target = $region32
    $region31: #{a_call__.3} parent=5 // pred_region
      // Predicated region
      $region33: #{a_call__.3} parent=31 // pred_check
        %p178 = pneg %p31
      $region34: #{a_call__.3} parent=31 // pred_check_branch
        %180 = sbr.rel (%p178) target = $region36
      $region35: #{a_call__.3} parent=31 // pred_region
        %p181 = scmp.lt.s32.totalorder %s11, 1
        %s182 = scalar_select %p181, %s11, 1
        %s183 = smul.addr %s182, 4
        %s184 = smul.addr %s183, 4
        %s185 = scalar_lea.vmem %s0, %s184
      $region36: #{a_call__.3} parent=31 // pred_fallthru
        _
    $region32: #{a_call__.3} parent=5 // pred_fallthru
      _
    %p186 = scmp.le.s32.totalorder 1, %s11
    %p187 = scmp.lt.s32.totalorder %s11, 3
    %p188 = pnand %p186, %p187
    %p189 = pneg %p188
    // Predicated region
    $region37: #{a_call__.3} parent=5 // pred_check
      _
    $region38: #{a_call__.3} parent=5 // pred_check_branch
      %191 = sbr.rel (%p188) target = $region40
    $region39: #{a_call__.3} parent=5 // pred_region
      %s192 = ssub.s32 %s11, 1
      %p193 = scmp.lt.s32.totalorder %s16, 1
      %s194 = scalar_select %p193, %s16, 1
      %s195 = smul.addr %s194, 4
      %s196 = smul.addr %s195, 4
      %s197 = scalar_lea.vmem %s0, %s196
      %p198 = pneg %p37
      %p199 = pneg %p34
      %p200 = pneg %p58
      %p201 = pneg %p55
      %p202 = pneg %p79
      %p203 = pneg %p76
      %p204 = pneg %p100
      %p205 = pneg %p97
      %p206 = pneg %p121
      %p207 = pneg %p118
      %p208 = pneg %p147
      %p209 = pneg %p144
      %p210 = scmp.lt.s32.totalorder %s16, 1
      %s211 = scalar_select %p210, %s16, 1
      %s212 = smul.addr %s211, 8
      %s213 = smul.addr %s212, 4
      %s214 = scalar_lea.vmem %s5, %s213
      %p215 = scmp.lt.s32.totalorder %s16, 1
      %s216 = scalar_select %p215, %s16, 1
      %s217 = smul.addr %s216, 4
      %s218 = smul.addr %s217, 4
      %s219 = scalar_lea.vmem %s0, %s218
      %p220 = scmp.lt.s32.totalorder %s16, 1
      %s221 = scalar_select %p220, %s16, 1
      %s222 = smul.addr %s221, 8
      %s223 = smul.addr %s222, 4
      %s224 = scalar_lea.vmem %s5, %s223
      %v226 = vld [vmem:[%s219] sm:$0xf]
      %v227 = vld [vmem:[%s219 + $0x4] sm:$0xf]
      %v228 = vld [vmem:[%s219 + $0x8] sm:$0xf]
      %v229 = vld [vmem:[%s219 + $0xc] sm:$0xf]
      %v230 = vunpack.c.l.bf16 %v226
      %v231 = vunpack.c.l.bf16 %v227
      %v232 = vunpack.c.l.bf16 %v228
      %v233 = vunpack.c.l.bf16 %v229
      %v234 = vld [vmem:[%s3] sm:$0x1]
      %vm235 = vcmask 261120
      %v236 = vsel %vm235, %v230, 0.0
      %v237 = vsel %vm235, %v231, 0.0
      %v238 = vsel %vm235, %v232, 0.0
      %v239 = vsel %vm235, %v233, 0.0
      %v241 = vlaneseq
      %v242 = vshrl.u32 %v241, 7
      %v243 = vsub.s32 0, %v242
      %v244 = vrot.slane %v234, %v243
      %245 = vrot.lane.b32.xlu0 %v244, 1
      %v246 = vpop.permute.xlu0 %245
      %v248 = vmul.f32 %v236, %v246
      %v249 = vmul.f32 %v237, %v246
      %v250 = vmul.f32 %v238, %v246
      %v251 = vmul.f32 %v239, %v246
      %252 = vrot.lane.b32.xlu0 %v244, 9
      %v253 = vpop.permute.xlu0 %252
      %v255 = vmul.f32 %v236, %v253
      %v256 = vmul.f32 %v237, %v253
      %v257 = vmul.f32 %v238, %v253
      %v258 = vmul.f32 %v239, %v253
      %v259 = vld [vmem:[%s1] sm:$0xf]
      %v260 = vld [vmem:[%s1 + $0x4] sm:$0xf]
      %v261 = vld [vmem:[%s1 + $0x8] sm:$0xf]
      %v262 = vld [vmem:[%s1 + $0xc] sm:$0xf]
      %v263 = vld [vmem:[%s1 + $0x10] sm:$0xf]
      %v264 = vld [vmem:[%s1 + $0x14] sm:$0xf]
      %v265 = vld [vmem:[%s1 + $0x18] sm:$0xf]
      %v266 = vld [vmem:[%s1 + $0x1c] sm:$0xf]
      %s267 = scalar_lea.vmem %s1, 32
      %v268 = vld [vmem:[%s267] sm:$0xf]
      %v269 = vld [vmem:[%s267 + $0x4] sm:$0xf]
      %v270 = vld [vmem:[%s267 + $0x8] sm:$0xf]
      %v271 = vld [vmem:[%s267 + $0xc] sm:$0xf]
      %v272 = vld [vmem:[%s267 + $0x10] sm:$0xf]
      %v273 = vld [vmem:[%s267 + $0x14] sm:$0xf]
      %v274 = vld [vmem:[%s267 + $0x18] sm:$0xf]
      %v275 = vld [vmem:[%s267 + $0x1c] sm:$0xf]
      %v276 = vpack.c.bf16 %v237, %v236
      %v277 = vpack.c.bf16 %v239, %v238
      %v286 = vunpack.c.l.b16 %v268
      %v287 = vunpack.c.l.b16 %v269
      %v288 = vunpack.c.l.b16 %v270
      %v289 = vunpack.c.l.b16 %v271
      %v290 = vunpack.c.l.b16 %v272
      %v291 = vunpack.c.l.b16 %v273
      %v292 = vunpack.c.l.b16 %v274
      %v293 = vunpack.c.l.b16 %v275
      %v294 = vpack.c.b16 %v287, %v286
      %v295 = vpack.c.b16 %v289, %v288
      %v296 = vpack.c.b16 %v291, %v290
      %v297 = vpack.c.b16 %v293, %v292
      %300 = vrot.lane.b32.xlu0 %v276, 120
      %v301 = vpop.permute.xlu0 %300
      %302 = vrot.lane.b32.xlu0 %v277, 120
      %v303 = vpop.permute.xlu0 %302
      %v307 = vsel %vm235, %v294, 0
      %v310 = vsel %vm235, %v295, 0
      %v313 = vsel %vm235, %v296, 0
      %v316 = vsel %vm235, %v297, 0
      %318 = vmatprep.subr.bf16.mxu0 0
      %319 = vmatpush1.bf16.msra.mxu0 0
      %320 = vmatprep.subr.bf16.mxu0 0
      %321 = vmatpush1.bf16.msra.mxu0 0
      %322 = vmatprep.subr.bf16.mxu0 0
      %323 = vmatpush1.bf16.msra.mxu0 0
      %324 = vmatprep.subr.bf16.mxu0 0
      %325 = vmatpush1.bf16.msra.mxu0 0
      %326 = vmatprep.subr.bf16.mxu0 0
      %327 = vmatpush1.bf16.msra.mxu0 0
      %328 = vmatprep.subr.bf16.mxu0 0
      %329 = vmatpush1.bf16.msra.mxu0 0
      %330 = vmatprep.subr.bf16.mxu0 0
      %331 = vmatpush1.bf16.msra.mxu0 %v303
      %332 = vmatprep.subr.bf16.mxu0 0
      %333 = vmatpush1.bf16.msra.mxu0 %v301
      %334 = vmatprep.subr.bf16.mxu0 0
      %335 = vmatpush2.bf16.msra.mxu0 0
      %336 = vmatprep.subr.bf16.mxu0 0
      %337 = vmatpush2.bf16.msra.mxu0 0
      %338 = vmatprep.subr.bf16.mxu0 0
      %339 = vmatpush2.bf16.msra.mxu0 0
      %340 = vmatprep.subr.bf16.mxu0 0
      %341 = vmatpush2.bf16.msra.mxu0 0
      %342 = vmatprep.subr.bf16.mxu0 0
      %343 = vmatpush2.bf16.msra.mxu0 0
      %344 = vmatprep.subr.bf16.mxu0 0
      %345 = vmatpush2.bf16.msra.mxu0 0
      %346 = vmatprep.subr.bf16.mxu0 0
      %347 = vmatpush2.bf16.msra.mxu0 0
      %348 = vmatprep.subr.bf16.mxu0 0
      %349 = vmatpush2.bf16.msra.mxu0 0
      %350 = vmatprep.mubr.bf16.mxu0 0
      %351 = vmatmul.mubr.bf16.gmra.mxu0 %v307
      %v352 = vpop.f32.mrf.mxu0
      %v353 = vadd.f32 0.0, %v352
      %v354 = vpop.f32.mrf.mxu0
      %v355 = vpop.f32.mrf.mxu0
      %v356 = vadd.f32 0.0, %v355
      %v357 = vpop.f32.mrf.mxu0
      %358 = vmatprep.mubr.bf16.mxu0 0
      %359 = vmatmul.mubr.bf16.gmra.mxu0 %v310
      %v360 = vpop.f32.mrf.mxu0
      %v361 = vadd.f32 0.0, %v360
      %v362 = vpop.f32.mrf.mxu0
      %v363 = vpop.f32.mrf.mxu0
      %v364 = vadd.f32 0.0, %v363
      %v365 = vpop.f32.mrf.mxu0
      %366 = vmatprep.mubr.bf16.mxu0 0
      %367 = vmatmul.mubr.bf16.gmra.mxu0 %v313
      %v368 = vpop.f32.mrf.mxu0
      %v369 = vadd.f32 0.0, %v368
      %v370 = vpop.f32.mrf.mxu0
      %v371 = vpop.f32.mrf.mxu0
      %v372 = vadd.f32 0.0, %v371
      %v373 = vpop.f32.mrf.mxu0
      %374 = vmatprep.mubr.bf16.mxu0 0
      %375 = vmatmul.mubr.bf16.gmra.mxu0 %v316
      %v376 = vpop.f32.mrf.mxu0
      %v377 = vadd.f32 0.0, %v376
      %v378 = vpop.f32.mrf.mxu0
      %v379 = vpop.f32.mrf.mxu0
      %v380 = vadd.f32 0.0, %v379
      %v381 = vpop.f32.mrf.mxu0
      %382 = vdwg.mxu0
      %v391 = vunpack.c.l.b16 %v259
      %v392 = vunpack.c.l.b16 %v260
      %v393 = vunpack.c.l.b16 %v261
      %v394 = vunpack.c.l.b16 %v262
      %v395 = vunpack.c.l.b16 %v263
      %v396 = vunpack.c.l.b16 %v264
      %v397 = vunpack.c.l.b16 %v265
      %v398 = vunpack.c.l.b16 %v266
      %v399 = vpack.c.b16 %v392, %v391
      %v400 = vpack.c.b16 %v394, %v393
      %v401 = vpack.c.b16 %v396, %v395
      %v402 = vpack.c.b16 %v398, %v397
      %v407 = vunpack.c.l.b16 %v226
      %v408 = vunpack.c.l.b16 %v227
      %v409 = vunpack.c.l.b16 %v228
      %v410 = vunpack.c.l.b16 %v229
      %v411 = vpack.c.b16 %v408, %v407
      %v412 = vpack.c.b16 %v410, %v409
      %v416 = vsel %vm235, %v399, 0
      %v419 = vsel %vm235, %v400, 0
      %v422 = vsel %vm235, %v401, 0
      %v425 = vsel %vm235, %v402, 0
      %427 = vmatprep.subr.bf16.mxu0 0
      %428 = vmatpush1.bf16.msra.mxu0 0
      %429 = vmatprep.subr.bf16.mxu0 0
      %430 = vmatpush1.bf16.msra.mxu0 0
      %431 = vmatprep.subr.bf16.mxu0 0
      %432 = vmatpush1.bf16.msra.mxu0 0
      %433 = vmatprep.subr.bf16.mxu0 0
      %434 = vmatpush1.bf16.msra.mxu0 0
      %435 = vmatprep.subr.bf16.mxu0 0
      %436 = vmatpush1.bf16.msra.mxu0 0
      %437 = vmatprep.subr.bf16.mxu0 0
      %438 = vmatpush1.bf16.msra.mxu0 0
      %439 = vmatprep.subr.bf16.mxu0 0
      %440 = vmatpush1.bf16.msra.mxu0 %v412
      %441 = vmatprep.subr.bf16.mxu0 0
      %442 = vmatpush1.bf16.msra.mxu0 %v411
      %443 = vmatprep.subr.bf16.mxu0 0
      %444 = vmatpush2.bf16.msra.mxu0 0
      %445 = vmatprep.subr.bf16.mxu0 0
      %446 = vmatpush2.bf16.msra.mxu0 0
      %447 = vmatprep.subr.bf16.mxu0 0
      %448 = vmatpush2.bf16.msra.mxu0 0
      %449 = vmatprep.subr.bf16.mxu0 0
      %450 = vmatpush2.bf16.msra.mxu0 0
      %451 = vmatprep.subr.bf16.mxu0 0
      %452 = vmatpush2.bf16.msra.mxu0 0
      %453 = vmatprep.subr.bf16.mxu0 0
      %454 = vmatpush2.bf16.msra.mxu0 0
      %455 = vmatprep.subr.bf16.mxu0 0
      %456 = vmatpush2.bf16.msra.mxu0 0
      %457 = vmatprep.subr.bf16.mxu0 0
      %458 = vmatpush2.bf16.msra.mxu0 0
      %459 = vmatprep.mubr.bf16.mxu0 0
      %460 = vmatmul.mubr.bf16.gmra.mxu0 %v416
      %v461 = vpop.f32.mrf.mxu0
      %v462 = vadd.f32 %v353, %v461
      %v463 = vpop.f32.mrf.mxu0
      %v464 = vpop.f32.mrf.mxu0
      %v465 = vadd.f32 %v356, %v464
      %v466 = vpop.f32.mrf.mxu0
      %467 = vmatprep.mubr.bf16.mxu0 0
      %468 = vmatmul.mubr.bf16.gmra.mxu0 %v419
      %v469 = vpop.f32.mrf.mxu0
      %v470 = vadd.f32 %v361, %v469
      %v471 = vpop.f32.mrf.mxu0
      %v472 = vpop.f32.mrf.mxu0
      %v473 = vadd.f32 %v364, %v472
      %v474 = vpop.f32.mrf.mxu0
      %475 = vmatprep.mubr.bf16.mxu0 0
      %476 = vmatmul.mubr.bf16.gmra.mxu0 %v422
      %v477 = vpop.f32.mrf.mxu0
      %v478 = vadd.f32 %v369, %v477
      %v479 = vpop.f32.mrf.mxu0
      %v480 = vpop.f32.mrf.mxu0
      %v481 = vadd.f32 %v372, %v480
      %v482 = vpop.f32.mrf.mxu0
      %483 = vmatprep.mubr.bf16.mxu0 0
      %484 = vmatmul.mubr.bf16.gmra.mxu0 %v425
      %v485 = vpop.f32.mrf.mxu0
      %v486 = vadd.f32 %v377, %v485
      %v487 = vpop.f32.mrf.mxu0
      %v488 = vpop.f32.mrf.mxu0
      %v489 = vadd.f32 %v380, %v488
      %v490 = vpop.f32.mrf.mxu0
      %491 = vdwg.mxu0
      %s492 = scalar_lea.vmem %s1, 64
      %v493 = vld [vmem:[%s492] sm:$0xf]
      %v494 = vld [vmem:[%s492 + $0x4] sm:$0xf]
      %v495 = vld [vmem:[%s492 + $0x8] sm:$0xf]
      %v496 = vld [vmem:[%s492 + $0xc] sm:$0xf]
      %v497 = vld [vmem:[%s492 + $0x10] sm:$0xf]
      %v498 = vld [vmem:[%s492 + $0x14] sm:$0xf]
      %v499 = vld [vmem:[%s492 + $0x18] sm:$0xf]
      %v500 = vld [vmem:[%s492 + $0x1c] sm:$0xf]
      %v501 = vpack.c.bf16 %v249, %v248
      %v502 = vpack.c.bf16 %v251, %v250
      %v511 = vunpack.c.l.b16 %v493
      %v512 = vunpack.c.l.b16 %v494
      %v513 = vunpack.c.l.b16 %v495
      %v514 = vunpack.c.l.b16 %v496
      %v515 = vunpack.c.l.b16 %v497
      %v516 = vunpack.c.l.b16 %v498
      %v517 = vunpack.c.l.b16 %v499
      %v518 = vunpack.c.l.b16 %v500
      %v519 = vpack.c.b16 %v512, %v511
      %v520 = vpack.c.b16 %v514, %v513
      %v521 = vpack.c.b16 %v516, %v515
      %v522 = vpack.c.b16 %v518, %v517
      %525 = vrot.lane.b32.xlu0 %v501, 127
      %v526 = vpop.permute.xlu0 %525
      %527 = vrot.lane.b32.xlu0 %v502, 127
      %v528 = vpop.permute.xlu0 %527
      %v532 = vsel %vm235, %v519, 0
      %v535 = vsel %vm235, %v520, 0
      %v538 = vsel %vm235, %v521, 0
      %v541 = vsel %vm235, %v522, 0
      %543 = vmatprep.subr.bf16.mxu0 0
      %544 = vmatpush1.bf16.msra.mxu0 0
      %545 = vmatprep.subr.bf16.mxu0 0
      %546 = vmatpush1.bf16.msra.mxu0 0
      %547 = vmatprep.subr.bf16.mxu0 0
      %548 = vmatpush1.bf16.msra.mxu0 0
      %549 = vmatprep.subr.bf16.mxu0 0
      %550 = vmatpush1.bf16.msra.mxu0 0
      %551 = vmatprep.subr.bf16.mxu0 0
      %552 = vmatpush1.bf16.msra.mxu0 0
      %553 = vmatprep.subr.bf16.mxu0 0
      %554 = vmatpush1.bf16.msra.mxu0 0
      %555 = vmatprep.subr.bf16.mxu0 0
      %556 = vmatpush1.bf16.msra.mxu0 %v528
      %557 = vmatprep.subr.bf16.mxu0 0
      %558 = vmatpush1.bf16.msra.mxu0 %v526
      %559 = vmatprep.subr.bf16.mxu0 0
      %560 = vmatpush2.bf16.msra.mxu0 0
      %561 = vmatprep.subr.bf16.mxu0 0
      %562 = vmatpush2.bf16.msra.mxu0 0
      %563 = vmatprep.subr.bf16.mxu0 0
      %564 = vmatpush2.bf16.msra.mxu0 0
      %565 = vmatprep.subr.bf16.mxu0 0
      %566 = vmatpush2.bf16.msra.mxu0 0
      %567 = vmatprep.subr.bf16.mxu0 0
      %568 = vmatpush2.bf16.msra.mxu0 0
      %569 = vmatprep.subr.bf16.mxu0 0
      %570 = vmatpush2.bf16.msra.mxu0 0
      %571 = vmatprep.subr.bf16.mxu0 0
      %572 = vmatpush2.bf16.msra.mxu0 0
      %573 = vmatprep.subr.bf16.mxu0 0
      %574 = vmatpush2.bf16.msra.mxu0 0
      %575 = vmatprep.mubr.bf16.mxu0 0
      %576 = vmatmul.mubr.bf16.gmra.mxu0 %v532
      %v577 = vpop.f32.mrf.mxu0
      %v578 = vadd.f32 0.0, %v577
      %v579 = vpop.f32.mrf.mxu0
      %v580 = vpop.f32.mrf.mxu0
      %v581 = vadd.f32 0.0, %v580
      %v582 = vpop.f32.mrf.mxu0
      %583 = vmatprep.mubr.bf16.mxu0 0
      %584 = vmatmul.mubr.bf16.gmra.mxu0 %v535
      %v585 = vpop.f32.mrf.mxu0
      %v586 = vadd.f32 0.0, %v585
      %v587 = vpop.f32.mrf.mxu0
      %v588 = vpop.f32.mrf.mxu0
      %v589 = vadd.f32 0.0, %v588
      %v590 = vpop.f32.mrf.mxu0
      %591 = vmatprep.mubr.bf16.mxu0 0
      %592 = vmatmul.mubr.bf16.gmra.mxu0 %v538
      %v593 = vpop.f32.mrf.mxu0
      %v594 = vadd.f32 0.0, %v593
      %v595 = vpop.f32.mrf.mxu0
      %v596 = vpop.f32.mrf.mxu0
      %v597 = vadd.f32 0.0, %v596
      %v598 = vpop.f32.mrf.mxu0
      %599 = vmatprep.mubr.bf16.mxu0 0
      %600 = vmatmul.mubr.bf16.gmra.mxu0 %v541
      %v601 = vpop.f32.mrf.mxu0
      %v602 = vadd.f32 0.0, %v601
      %v603 = vpop.f32.mrf.mxu0
      %v604 = vpop.f32.mrf.mxu0
      %v605 = vadd.f32 0.0, %v604
      %v606 = vpop.f32.mrf.mxu0
      %607 = vdwg.mxu0
      %v608 = vadd.f32 %v462, %v578
      %v609 = vadd.f32 %v465, %v581
      %v610 = vadd.f32 %v470, %v586
      %v611 = vadd.f32 %v473, %v589
      %v612 = vadd.f32 %v478, %v594
      %v613 = vadd.f32 %v481, %v597
      %v614 = vadd.f32 %v486, %v602
      %v615 = vadd.f32 %v489, %v605
      %s616 = scalar_lea.vmem %s1, 96
      %v617 = vld [vmem:[%s616] sm:$0xf]
      %v618 = vld [vmem:[%s616 + $0x4] sm:$0xf]
      %v619 = vld [vmem:[%s616 + $0x8] sm:$0xf]
      %v620 = vld [vmem:[%s616 + $0xc] sm:$0xf]
      %v621 = vld [vmem:[%s616 + $0x10] sm:$0xf]
      %v622 = vld [vmem:[%s616 + $0x14] sm:$0xf]
      %v623 = vld [vmem:[%s616 + $0x18] sm:$0xf]
      %v624 = vld [vmem:[%s616 + $0x1c] sm:$0xf]
      %v625 = vpack.c.bf16 %v256, %v255
      %v626 = vpack.c.bf16 %v258, %v257
      %v635 = vunpack.c.l.b16 %v617
      %v636 = vunpack.c.l.b16 %v618
      %v637 = vunpack.c.l.b16 %v619
      %v638 = vunpack.c.l.b16 %v620
      %v639 = vunpack.c.l.b16 %v621
      %v640 = vunpack.c.l.b16 %v622
      %v641 = vunpack.c.l.b16 %v623
      %v642 = vunpack.c.l.b16 %v624
      %v643 = vpack.c.b16 %v636, %v635
      %v644 = vpack.c.b16 %v638, %v637
      %v645 = vpack.c.b16 %v640, %v639
      %v646 = vpack.c.b16 %v642, %v641
      %649 = vrot.lane.b32.xlu0 %v625, 119
      %v650 = vpop.permute.xlu0 %649
      %651 = vrot.lane.b32.xlu0 %v626, 119
      %v652 = vpop.permute.xlu0 %651
      %v656 = vsel %vm235, %v643, 0
      %v659 = vsel %vm235, %v644, 0
      %v662 = vsel %vm235, %v645, 0
      %v665 = vsel %vm235, %v646, 0
      %667 = vmatprep.subr.bf16.mxu0 0
      %668 = vmatpush1.bf16.msra.mxu0 0
      %669 = vmatprep.subr.bf16.mxu0 0
      %670 = vmatpush1.bf16.msra.mxu0 0
      %671 = vmatprep.subr.bf16.mxu0 0
      %672 = vmatpush1.bf16.msra.mxu0 0
      %673 = vmatprep.subr.bf16.mxu0 0
      %674 = vmatpush1.bf16.msra.mxu0 0
      %675 = vmatprep.subr.bf16.mxu0 0
      %676 = vmatpush1.bf16.msra.mxu0 0
      %677 = vmatprep.subr.bf16.mxu0 0
      %678 = vmatpush1.bf16.msra.mxu0 0
      %679 = vmatprep.subr.bf16.mxu0 0
      %680 = vmatpush1.bf16.msra.mxu0 %v652
      %681 = vmatprep.subr.bf16.mxu0 0
      %682 = vmatpush1.bf16.msra.mxu0 %v650
      %683 = vmatprep.subr.bf16.mxu0 0
      %684 = vmatpush2.bf16.msra.mxu0 0
      %685 = vmatprep.subr.bf16.mxu0 0
      %686 = vmatpush2.bf16.msra.mxu0 0
      %687 = vmatprep.subr.bf16.mxu0 0
      %688 = vmatpush2.bf16.msra.mxu0 0
      %689 = vmatprep.subr.bf16.mxu0 0
      %690 = vmatpush2.bf16.msra.mxu0 0
      %691 = vmatprep.subr.bf16.mxu0 0
      %692 = vmatpush2.bf16.msra.mxu0 0
      %693 = vmatprep.subr.bf16.mxu0 0
      %694 = vmatpush2.bf16.msra.mxu0 0
      %695 = vmatprep.subr.bf16.mxu0 0
      %696 = vmatpush2.bf16.msra.mxu0 0
      %697 = vmatprep.subr.bf16.mxu0 0
      %698 = vmatpush2.bf16.msra.mxu0 0
      %699 = vmatprep.mubr.bf16.mxu0 0
      %700 = vmatmul.mubr.bf16.gmra.mxu0 %v656
      %v701 = vpop.f32.mrf.mxu0
      %v702 = vadd.f32 0.0, %v701
      %v703 = vpop.f32.mrf.mxu0
      %v704 = vpop.f32.mrf.mxu0
      %v705 = vadd.f32 0.0, %v704
      %v706 = vpop.f32.mrf.mxu0
      %707 = vmatprep.mubr.bf16.mxu0 0
      %708 = vmatmul.mubr.bf16.gmra.mxu0 %v659
      %v709 = vpop.f32.mrf.mxu0
      %v710 = vadd.f32 0.0, %v709
      %v711 = vpop.f32.mrf.mxu0
      %v712 = vpop.f32.mrf.mxu0
      %v713 = vadd.f32 0.0, %v712
      %v714 = vpop.f32.mrf.mxu0
      %715 = vmatprep.mubr.bf16.mxu0 0
      %716 = vmatmul.mubr.bf16.gmra.mxu0 %v662
      %v717 = vpop.f32.mrf.mxu0
      %v718 = vadd.f32 0.0, %v717
      %v719 = vpop.f32.mrf.mxu0
      %v720 = vpop.f32.mrf.mxu0
      %v721 = vadd.f32 0.0, %v720
      %v722 = vpop.f32.mrf.mxu0
      %723 = vmatprep.mubr.bf16.mxu0 0
      %724 = vmatmul.mubr.bf16.gmra.mxu0 %v665
      %v725 = vpop.f32.mrf.mxu0
      %v726 = vadd.f32 0.0, %v725
      %v727 = vpop.f32.mrf.mxu0
      %v728 = vpop.f32.mrf.mxu0
      %v729 = vadd.f32 0.0, %v728
      %v730 = vpop.f32.mrf.mxu0
      %731 = vdwg.mxu0
      %v732 = vadd.f32 %v608, %v702
      %v733 = vadd.f32 %v609, %v705
      %v734 = vadd.f32 %v610, %v710
      %v735 = vadd.f32 %v611, %v713
      %v736 = vadd.f32 %v612, %v718
      %v737 = vadd.f32 %v613, %v721
      %v738 = vadd.f32 %v614, %v726
      %v739 = vadd.f32 %v615, %v729
      %v740 = vld [vmem:[%s2] sm:$0xff]
      %v741 = vld [vmem:[%s2 + $0x8] sm:$0xff]
      %v742 = vld [vmem:[%s2 + $0x10] sm:$0xff]
      %v743 = vld [vmem:[%s2 + $0x18] sm:$0xff]
      %v744 = vld [vmem:[%s2 + $0x20] sm:$0xff]
      %v745 = vld [vmem:[%s2 + $0x28] sm:$0xff]
      %v746 = vld [vmem:[%s2 + $0x30] sm:$0xff]
      %v747 = vld [vmem:[%s2 + $0x38] sm:$0xff]
      %749 = vset.pattern.permute.xlu0 0
      %750 = vperm.xlu0 %749, %v740
      %v751 = vpop.permute.xlu0 %750
      %754 = vset.pattern.permute.xlu0 0
      %755 = vperm.xlu0 %754, %v741
      %v756 = vpop.permute.xlu0 %755
      %759 = vset.pattern.permute.xlu0 0
      %760 = vperm.xlu0 %759, %v742
      %v761 = vpop.permute.xlu0 %760
      %764 = vset.pattern.permute.xlu0 0
      %765 = vperm.xlu0 %764, %v743
      %v766 = vpop.permute.xlu0 %765
      %769 = vset.pattern.permute.xlu0 0
      %770 = vperm.xlu0 %769, %v744
      %v771 = vpop.permute.xlu0 %770
      %774 = vset.pattern.permute.xlu0 0
      %775 = vperm.xlu0 %774, %v745
      %v776 = vpop.permute.xlu0 %775
      %779 = vset.pattern.permute.xlu0 0
      %780 = vperm.xlu0 %779, %v746
      %v781 = vpop.permute.xlu0 %780
      %784 = vset.pattern.permute.xlu0 0
      %785 = vperm.xlu0 %784, %v747
      %v786 = vpop.permute.xlu0 %785
      %v788 = vadd.f32 %v732, %v751
      %v789 = vadd.f32 %v733, %v756
      %v790 = vadd.f32 %v734, %v761
      %v791 = vadd.f32 %v735, %v766
      %v792 = vadd.f32 %v736, %v771
      %v793 = vadd.f32 %v737, %v776
      %v794 = vadd.f32 %v738, %v781
      %v795 = vadd.f32 %v739, %v786
      %vm796 = vcmp.ge.f32.partialorder %v788, 0.0
      %vm797 = vcmp.ge.f32.partialorder %v789, 0.0
      %vm798 = vcmp.ge.f32.partialorder %v790, 0.0
      %vm799 = vcmp.ge.f32.partialorder %v791, 0.0
      %vm800 = vcmp.ge.f32.partialorder %v792, 0.0
      %vm801 = vcmp.ge.f32.partialorder %v793, 0.0
      %vm802 = vcmp.ge.f32.partialorder %v794, 0.0
      %vm803 = vcmp.ge.f32.partialorder %v795, 0.0
      %v804 = vmul.f32 %v788, 0.01
      %v805 = vmul.f32 %v789, 0.01
      %v806 = vmul.f32 %v790, 0.01
      %v807 = vmul.f32 %v791, 0.01
      %v808 = vmul.f32 %v792, 0.01
      %v809 = vmul.f32 %v793, 0.01
      %v810 = vmul.f32 %v794, 0.01
      %v811 = vmul.f32 %v795, 0.01
      %v812 = vsel %vm796, %v788, %v804
      %v813 = vsel %vm797, %v789, %v805
      %v814 = vsel %vm798, %v790, %v806
      %v815 = vsel %vm799, %v791, %v807
      %v816 = vsel %vm800, %v792, %v808
      %v817 = vsel %vm801, %v793, %v809
      %v818 = vsel %vm802, %v794, %v810
      %v819 = vsel %vm803, %v795, %v811
      %v820 = vpack.c.bf16 %v813, %v812
      %v821 = vpack.c.bf16 %v815, %v814
      %v822 = vpack.c.bf16 %v817, %v816
      %v823 = vpack.c.bf16 %v819, %v818
      %v828 = vunpack.c.l.b16 %v820
      %v829 = vunpack.c.h.b16 %v820
      %v830 = vunpack.c.l.b16 %v821
      %v831 = vunpack.c.h.b16 %v821
      %v832 = vunpack.c.l.b16 %v822
      %v833 = vunpack.c.h.b16 %v822
      %v834 = vunpack.c.l.b16 %v823
      %v835 = vunpack.c.h.b16 %v823
      %v836 = vpack.c.b16 %v828, %v828
      %v837 = vpack.c.b16 %v829, %v829
      %v838 = vpack.c.b16 %v830, %v830
      %v839 = vpack.c.b16 %v831, %v831
      %v840 = vpack.c.b16 %v832, %v832
      %v841 = vpack.c.b16 %v833, %v833
      %v842 = vpack.c.b16 %v834, %v834
      %v843 = vpack.c.b16 %v835, %v835
      %vm852 = vcmask 257024
      %853 = vst.msk [vmem:[%s224] sm:$0xf] %vm852, %v836
      %854 = vst.msk [vmem:[%s224 + $0x4] sm:$0xf] %vm852, %v837
      %855 = vst.msk [vmem:[%s224 + $0x8] sm:$0xf] %vm852, %v838
      %856 = vst.msk [vmem:[%s224 + $0xc] sm:$0xf] %vm852, %v839
      %857 = vst.msk [vmem:[%s224 + $0x10] sm:$0xf] %vm852, %v840
      %858 = vst.msk [vmem:[%s224 + $0x14] sm:$0xf] %vm852, %v841
      %859 = vst.msk [vmem:[%s224 + $0x18] sm:$0xf] %vm852, %v842
      %860 = vst.msk [vmem:[%s224 + $0x1c] sm:$0xf] %vm852, %v843
      %p861 = scmp.lt.s32.totalorder %s16, 1
      %s862 = scalar_select %p861, %s16, 1
      %s863 = smul.addr %s862, 8
      %s864 = smul.addr %s863, 4
      %s865 = scalar_lea.vmem %s5, %s864
      // Predicated region
      $region41: #{a_call__.3} parent=39 // pred_check
        %p866 = pneg %p144
      $region42: #{a_call__.3} parent=39 // pred_check_branch
        %868 = sbr.rel (%p866) target = $region44
      $region43: #{a_call__.3} parent=39 // pred_region
        _
      $region44: #{a_call__.3} parent=39 // pred_fallthru
        _
    $region40: #{a_call__.3} parent=5 // pred_fallthru
      _
    %p869 = scmp.le.s32.totalorder 2, %s11
    // Predicated region
    $region45: #{a_call__.3} parent=5 // pred_check
      %p870 = pneg %p869
    $region46: #{a_call__.3} parent=5 // pred_check_branch
      %872 = sbr.rel (%p870) target = $region48
    $region47: #{a_call__.3} parent=5 // pred_region
      %s873 = ssub.s32 %s11, 2
      // Predicated region
      $region49: #{a_call__.3} parent=47 // pred_check
        %p874 = pneg %p150
      $region50: #{a_call__.3} parent=47 // pred_check_branch
        %876 = sbr.rel (%p874) target = $region52
      $region51: #{a_call__.3} parent=47 // pred_region
        %p877 = scmp.lt.s32.totalorder %s17, 1
        %s878 = scalar_select %p877, %s17, 1
        %s879 = smul.addr %s878, 8
        %s880 = smul.addr %s879, 4
        %s881 = scalar_lea.vmem %s5, %s880
      $region52: #{a_call__.3} parent=47 // pred_fallthru
        _
    $region48: #{a_call__.3} parent=5 // pred_fallthru
      _
  $region6: #{a_call__.3} parent=0 // loop_footer
    %s15 = sadd.s32 1, %s11
  $region7: #{a_call__.3} parent=0 // loop_footer_branch
    %10 = sbr.rel target = $region3
  $region8: #{a_call__.3} parent=0 // loop_exit
    _

// kernel: a_call__.4
$region0: #{a_call__.4}
  #allocation0 [shape = 'u32[]', space=smem, size = 0x4, offset = 0x4, fixed_abs, tag = 'smem constant byte address 0x4 - core index']
  #allocation1 [shape = 'u32[144,128]{1,0:T(1,128)}', space=vmem, size = 0x12000, scoped, tag = 'internal scratch']
  %s0 = inlined_call_operand.vmem [shape: bf16[2,16,128], index: 0, kind: input, shape index: {}]
  %s1 = inlined_call_operand.vmem [shape: bf16[4,32,16], index: 1, kind: input, shape index: {}]
  %s2 = inlined_call_operand.vmem [shape: f32[32,128], index: 2, kind: input, shape index: {}]
  %s3 = inlined_call_operand.vmem [shape: f32[1,128], index: 3, kind: input, shape index: {}]
  %s4 = inlined_call_operand.vmem [shape: f32[1,128], index: 4, kind: input, shape index: {}]
  %s5 = inlined_call_operand.vmem [shape: bf16[2,32,128], index: 5, kind: output, shape index: {}]
  %s6 = sld [smem:[#allocation0]]
  $region53: #{a_call__.4} parent=0
    _
  %s8 = ssub.s32 1, %s6
  %s9 = scalar_select 0, %s8, %s6
  loop: start=0, step=1, limit=4
  $region2: #{a_call__.4} parent=0 // loop_pre_header
    _
  $region3: #{a_call__.4} parent=0 // loop_header
    %s11 = sphi 0, %s15
    %p12 = scmp.ge.s32.totalorder %s11, 4
    %s21 = sphi 0, %s23
    %s24 = sphi 0, %s21
    %s25 = sphi 0, %s24
    %s41 = sphi 0, %s25
    %s45 = sphi 0, %s45
    %s47 = sphi 0, %s45
    %s48 = sphi 0, %s47
    %s62 = sphi 0, %s48
    %s66 = sphi 0, %s66
    %s68 = sphi 0, %s66
    %s69 = sphi 0, %s68
    %s83 = sphi 0, %s69
    %s87 = sphi 0, %s87
    %s89 = sphi 0, %s87
    %s90 = sphi 0, %s89
    %s104 = sphi 0, %s90
    %s108 = sphi 0, %s108
    %s110 = sphi 0, %s108
    %s111 = sphi 0, %s110
    %s125 = sphi 0, %s111
    %s131 = sphi 0, %s133
    %s134 = sphi 0, %s131
    %s135 = sphi 0, %s134
    %s151 = sphi 0, %s135
  $region4: #{a_call__.4} parent=0 // loop_header_branch
    %14 = sbr.rel (%p12) target = $region8
  $region5: #{a_call__.4} parent=0 // loop_body
    %s16 = ssub.s32 %s11, 1
    %s17 = ssub.s32 %s11, 2
    %s18 = sadd.s32 %s11, 1
    %s19 = ssub.s32 %s11, %s18
    %p20 = scmp.eq.s32.totalorder %s19, 0
    %s22 = sadd.s32 %s21, 1
    %s23 = scalar_select %p20, %s21, %s22
    %p26 = pneg %p20
    %p27 = scmp.eq.s32.totalorder %s11, 1
    %p28 = por %p26, %p27
    %p29 = scmp.ne.s32.totalorder %s21, %s24
    %p30 = scmp.eq.s32.totalorder %s11, 0
    %p31 = por %p29, %p30
    %p32 = scmp.ne.s32.totalorder %s21, %s24
    %p33 = scmp.eq.s32.totalorder %s16, 1
    %p34 = por %p32, %p33
    %p35 = scmp.ne.s32.totalorder %s24, %s25
    %p36 = scmp.eq.s32.totalorder %s16, 0
    %p37 = por %p35, %p36
    %p38 = scmp.ne.s32.totalorder %s24, %s25
    %p39 = scmp.eq.s32.totalorder %s17, 1
    %p40 = por %p38, %p39
    %p42 = scmp.ne.s32.totalorder %s25, %s41
    %p43 = scmp.eq.s32.totalorder %s17, 0
    %p44 = por %p42, %p43
    %s46 = sadd.s32 %s45, 1
    %p49 = scmp.eq.s32.totalorder %s11, 1
    %p50 = scmp.ne.s32.totalorder %s45, %s47
    %p51 = scmp.eq.s32.totalorder %s11, 0
    %p52 = por %p50, %p51
    %p53 = scmp.ne.s32.totalorder %s45, %s47
    %p54 = scmp.eq.s32.totalorder %s16, 1
    %p55 = por %p53, %p54
    %p56 = scmp.ne.s32.totalorder %s47, %s48
    %p57 = scmp.eq.s32.totalorder %s16, 0
    %p58 = por %p56, %p57
    %p59 = scmp.ne.s32.totalorder %s47, %s48
    %p60 = scmp.eq.s32.totalorder %s17, 1
    %p61 = por %p59, %p60
    %p63 = scmp.ne.s32.totalorder %s48, %s62
    %p64 = scmp.eq.s32.totalorder %s17, 0
    %p65 = por %p63, %p64
    %s67 = sadd.s32 %s66, 1
    %p70 = scmp.eq.s32.totalorder %s11, 1
    %p71 = scmp.ne.s32.totalorder %s66, %s68
    %p72 = scmp.eq.s32.totalorder %s11, 0
    %p73 = por %p71, %p72
    %p74 = scmp.ne.s32.totalorder %s66, %s68
    %p75 = scmp.eq.s32.totalorder %s16, 1
    %p76 = por %p74, %p75
    %p77 = scmp.ne.s32.totalorder %s68, %s69
    %p78 = scmp.eq.s32.totalorder %s16, 0
    %p79 = por %p77, %p78
    %p80 = scmp.ne.s32.totalorder %s68, %s69
    %p81 = scmp.eq.s32.totalorder %s17, 1
    %p82 = por %p80, %p81
    %p84 = scmp.ne.s32.totalorder %s69, %s83
    %p85 = scmp.eq.s32.totalorder %s17, 0
    %p86 = por %p84, %p85
    %s88 = sadd.s32 %s87, 1
    %p91 = scmp.eq.s32.totalorder %s11, 1
    %p92 = scmp.ne.s32.totalorder %s87, %s89
    %p93 = scmp.eq.s32.totalorder %s11, 0
    %p94 = por %p92, %p93
    %p95 = scmp.ne.s32.totalorder %s87, %s89
    %p96 = scmp.eq.s32.totalorder %s16, 1
    %p97 = por %p95, %p96
    %p98 = scmp.ne.s32.totalorder %s89, %s90
    %p99 = scmp.eq.s32.totalorder %s16, 0
    %p100 = por %p98, %p99
    %p101 = scmp.ne.s32.totalorder %s89, %s90
    %p102 = scmp.eq.s32.totalorder %s17, 1
    %p103 = por %p101, %p102
    %p105 = scmp.ne.s32.totalorder %s90, %s104
    %p106 = scmp.eq.s32.totalorder %s17, 0
    %p107 = por %p105, %p106
    %s109 = sadd.s32 %s108, 1
    %p112 = scmp.eq.s32.totalorder %s11, 1
    %p113 = scmp.ne.s32.totalorder %s108, %s110
    %p114 = scmp.eq.s32.totalorder %s11, 0
    %p115 = por %p113, %p114
    %p116 = scmp.ne.s32.totalorder %s108, %s110
    %p117 = scmp.eq.s32.totalorder %s16, 1
    %p118 = por %p116, %p117
    %p119 = scmp.ne.s32.totalorder %s110, %s111
    %p120 = scmp.eq.s32.totalorder %s16, 0
    %p121 = por %p119, %p120
    %p122 = scmp.ne.s32.totalorder %s110, %s111
    %p123 = scmp.eq.s32.totalorder %s17, 1
    %p124 = por %p122, %p123
    %p126 = scmp.ne.s32.totalorder %s111, %s125
    %p127 = scmp.eq.s32.totalorder %s17, 0
    %p128 = por %p126, %p127
    %s129 = ssub.s32 %s11, %s18
    %p130 = scmp.eq.s32.totalorder %s129, 0
    %s132 = sadd.s32 %s131, 1
    %s133 = scalar_select %p130, %s131, %s132
    %p136 = pneg %p130
    %p137 = scmp.eq.s32.totalorder %s11, 1
    %p138 = por %p136, %p137
    %p139 = scmp.ne.s32.totalorder %s131, %s134
    %p140 = scmp.eq.s32.totalorder %s11, 0
    %p141 = por %p139, %p140
    %p142 = scmp.ne.s32.totalorder %s131, %s134
    %p143 = scmp.eq.s32.totalorder %s16, 1
    %p144 = por %p142, %p143
    %p145 = scmp.ne.s32.totalorder %s134, %s135
    %p146 = scmp.eq.s32.totalorder %s16, 0
    %p147 = por %p145, %p146
    %p148 = scmp.ne.s32.totalorder %s134, %s135
    %p149 = scmp.eq.s32.totalorder %s17, 1
    %p150 = por %p148, %p149
    %p152 = scmp.ne.s32.totalorder %s135, %s151
    %p153 = scmp.eq.s32.totalorder %s17, 0
    %p154 = por %p152, %p153
    %p155 = scmp.le.s32.totalorder 1, %s11
    %p156 = scmp.lt.s32.totalorder %s11, 3
    %p157 = pnand %p155, %p156
    %p158 = pneg %p157
    // Predicated region
    $region9: #{a_call__.4} parent=5 // pred_check
      _
    $region10: #{a_call__.4} parent=5 // pred_check_branch
      %160 = sbr.rel (%p157) target = $region12
    $region11: #{a_call__.4} parent=5 // pred_region
      %s161 = ssub.s32 %s11, 1
      // Predicated region
      $region13: #{a_call__.4} parent=11 // pred_check
        %p162 = pneg %p58
      $region14: #{a_call__.4} parent=11 // pred_check_branch
        %164 = sbr.rel (%p162) target = $region16
      $region15: #{a_call__.4} parent=11 // pred_region
        _
      $region16: #{a_call__.4} parent=11 // pred_fallthru
        _
      // Predicated region
      $region17: #{a_call__.4} parent=11 // pred_check
        %p165 = pneg %p79
      $region18: #{a_call__.4} parent=11 // pred_check_branch
        %167 = sbr.rel (%p165) target = $region20
      $region19: #{a_call__.4} parent=11 // pred_region
        _
      $region20: #{a_call__.4} parent=11 // pred_fallthru
        _
      // Predicated region
      $region21: #{a_call__.4} parent=11 // pred_check
        %p168 = pneg %p100
      $region22: #{a_call__.4} parent=11 // pred_check_branch
        %170 = sbr.rel (%p168) target = $region24
      $region23: #{a_call__.4} parent=11 // pred_region
        _
      $region24: #{a_call__.4} parent=11 // pred_fallthru
        _
      // Predicated region
      $region25: #{a_call__.4} parent=11 // pred_check
        %p171 = pneg %p121
      $region26: #{a_call__.4} parent=11 // pred_check_branch
        %173 = sbr.rel (%p171) target = $region28
      $region27: #{a_call__.4} parent=11 // pred_region
        _
      $region28: #{a_call__.4} parent=11 // pred_fallthru
        _
    $region12: #{a_call__.4} parent=5 // pred_fallthru
      _
    %p174 = scmp.lt.s32.totalorder %s11, 2
    // Predicated region
    $region29: #{a_call__.4} parent=5 // pred_check
      %p175 = pneg %p174
    $region30: #{a_call__.4} parent=5 // pred_check_branch
      %177 = sbr.rel (%p175) target = $region32
    $region31: #{a_call__.4} parent=5 // pred_region
      // Predicated region
      $region33: #{a_call__.4} parent=31 // pred_check
        %p178 = pneg %p31
      $region34: #{a_call__.4} parent=31 // pred_check_branch
        %180 = sbr.rel (%p178) target = $region36
      $region35: #{a_call__.4} parent=31 // pred_region
        %p181 = scmp.lt.s32.totalorder %s11, 1
        %s182 = scalar_select %p181, %s11, 1
        %s183 = smul.addr %s182, 2
        %s184 = smul.addr %s183, 4
        %s185 = scalar_lea.vmem %s0, %s184
      $region36: #{a_call__.4} parent=31 // pred_fallthru
        _
    $region32: #{a_call__.4} parent=5 // pred_fallthru
      _
    %p186 = scmp.le.s32.totalorder 1, %s11
    %p187 = scmp.lt.s32.totalorder %s11, 3
    %p188 = pnand %p186, %p187
    %p189 = pneg %p188
    // Predicated region
    $region37: #{a_call__.4} parent=5 // pred_check
      _
    $region38: #{a_call__.4} parent=5 // pred_check_branch
      %191 = sbr.rel (%p188) target = $region40
    $region39: #{a_call__.4} parent=5 // pred_region
      %s192 = ssub.s32 %s11, 1
      %p193 = scmp.lt.s32.totalorder %s16, 1
      %s194 = scalar_select %p193, %s16, 1
      %s195 = smul.addr %s194, 2
      %s196 = smul.addr %s195, 4
      %s197 = scalar_lea.vmem %s0, %s196
      %p198 = pneg %p37
      %p199 = pneg %p34
      %p200 = pneg %p58
      %p201 = pneg %p55
      %p202 = pneg %p79
      %p203 = pneg %p76
      %p204 = pneg %p100
      %p205 = pneg %p97
      %p206 = pneg %p121
      %p207 = pneg %p118
      %p208 = pneg %p147
      %p209 = pneg %p144
      %p210 = scmp.lt.s32.totalorder %s16, 1
      %s211 = scalar_select %p210, %s16, 1
      %s212 = smul.addr %s211, 4
      %s213 = smul.addr %s212, 4
      %s214 = scalar_lea.vmem %s5, %s213
      %p215 = scmp.lt.s32.totalorder %s16, 1
      %s216 = scalar_select %p215, %s16, 1
      %s217 = smul.addr %s216, 2
      %s218 = smul.addr %s217, 4
      %s219 = scalar_lea.vmem %s0, %s218
      %p220 = scmp.lt.s32.totalorder %s16, 1
      %s221 = scalar_select %p220, %s16, 1
      %s222 = smul.addr %s221, 4
      %s223 = smul.addr %s222, 4
      %s224 = scalar_lea.vmem %s5, %s223
      %v226 = vld [vmem:[%s219] sm:$0xf]
      %v227 = vld [vmem:[%s219 + $0x4] sm:$0xf]
      %v228 = vunpack.c.l.bf16 %v226
      %v229 = vunpack.c.l.bf16 %v227
      %v230 = vld [vmem:[%s3] sm:$0x1]
      %v231 = vld [vmem:[%s4] sm:$0x1]
      %232 = vrot.lane.b32.xlu0 %v228, 112
      %v233 = vpop.permute.xlu0 %232
      %234 = vrot.lane.b32.xlu0 %v229, 112
      %v235 = vpop.permute.xlu0 %234
      %v237 = vlaneseq
      %v238 = vshrl.u32 %v237, 7
      %v239 = vsub.s32 0, %v238
      %v240 = vrot.slane %v231, %v239
      %v242 = vmul.f32 %v233, %v240
      %v243 = vmul.f32 %v235, %v240
      %244 = vrot.lane.b32.xlu0 %v228, 127
      %v245 = vpop.permute.xlu0 %244
      %246 = vrot.lane.b32.xlu0 %v229, 127
      %v247 = vpop.permute.xlu0 %246
      %v249 = vlaneseq
      %v250 = vshrl.u32 %v249, 7
      %v251 = vsub.s32 0, %v250
      %v252 = vrot.slane %v230, %v251
      %v254 = vmul.f32 %v245, %v252
      %v255 = vmul.f32 %v247, %v252
      %256 = vrot.lane.b32.xlu0 %v242, 127
      %v257 = vpop.permute.xlu0 %256
      %258 = vrot.lane.b32.xlu0 %v243, 127
      %v259 = vpop.permute.xlu0 %258
      %v260 = vmul.f32 %v257, %v252
      %v261 = vmul.f32 %v259, %v252
      %v262 = vld [vmem:[%s1] sm:$0xf]
      %v263 = vld [vmem:[%s1 + $0x4] sm:$0xf]
      %v264 = vld [vmem:[%s1 + $0x8] sm:$0xf]
      %v265 = vld [vmem:[%s1 + $0xc] sm:$0xf]
      %s266 = scalar_lea.vmem %s1, 16
      %v267 = vld [vmem:[%s266] sm:$0xf]
      %v268 = vld [vmem:[%s266 + $0x4] sm:$0xf]
      %v269 = vld [vmem:[%s266 + $0x8] sm:$0xf]
      %v270 = vld [vmem:[%s266 + $0xc] sm:$0xf]
      %v271 = vpack.c.bf16 %v243, %v242
      %v276 = vunpack.c.l.b16 %v267
      %v277 = vunpack.c.l.b16 %v268
      %v278 = vunpack.c.l.b16 %v269
      %v279 = vunpack.c.l.b16 %v270
      %v280 = vpack.c.b16 %v277, %v276
      %v281 = vpack.c.b16 %v279, %v278
      %vm282 = vcmask 130048
      %v284 = vsel %vm282, %v280, 0
      %v287 = vsel %vm282, %v281, 0
      %289 = vmatprep.subr.bf16.mxu0 0
      %290 = vmatpush1.bf16.msra.mxu0 0
      %291 = vmatprep.subr.bf16.mxu0 0
      %292 = vmatpush1.bf16.msra.mxu0 0
      %293 = vmatprep.subr.bf16.mxu0 0
      %294 = vmatpush1.bf16.msra.mxu0 0
      %295 = vmatprep.subr.bf16.mxu0 0
      %296 = vmatpush1.bf16.msra.mxu0 0
      %297 = vmatprep.subr.bf16.mxu0 0
      %298 = vmatpush1.bf16.msra.mxu0 0
      %299 = vmatprep.subr.bf16.mxu0 0
      %300 = vmatpush1.bf16.msra.mxu0 0
      %301 = vmatprep.subr.bf16.mxu0 0
      %302 = vmatpush1.bf16.msra.mxu0 0
      %303 = vmatprep.subr.bf16.mxu0 0
      %304 = vmatpush1.bf16.msra.mxu0 %v271
      %305 = vmatprep.subr.bf16.mxu0 0
      %306 = vmatpush2.bf16.msra.mxu0 0
      %307 = vmatprep.subr.bf16.mxu0 0
      %308 = vmatpush2.bf16.msra.mxu0 0
      %309 = vmatprep.subr.bf16.mxu0 0
      %310 = vmatpush2.bf16.msra.mxu0 0
      %311 = vmatprep.subr.bf16.mxu0 0
      %312 = vmatpush2.bf16.msra.mxu0 0
      %313 = vmatprep.subr.bf16.mxu0 0
      %314 = vmatpush2.bf16.msra.mxu0 0
      %315 = vmatprep.subr.bf16.mxu0 0
      %316 = vmatpush2.bf16.msra.mxu0 0
      %317 = vmatprep.subr.bf16.mxu0 0
      %318 = vmatpush2.bf16.msra.mxu0 0
      %319 = vmatprep.subr.bf16.mxu0 0
      %320 = vmatpush2.bf16.msra.mxu0 0
      %321 = vmatprep.mubr.bf16.mxu0 0
      %322 = vmatmul.mubr.bf16.gmra.mxu0 %v284
      %v323 = vpop.f32.mrf.mxu0
      %v324 = vadd.f32 0.0, %v323
      %v325 = vpop.f32.mrf.mxu0
      %v326 = vpop.f32.mrf.mxu0
      %v327 = vadd.f32 0.0, %v326
      %v328 = vpop.f32.mrf.mxu0
      %329 = vmatprep.mubr.bf16.mxu0 0
      %330 = vmatmul.mubr.bf16.gmra.mxu0 %v287
      %v331 = vpop.f32.mrf.mxu0
      %v332 = vadd.f32 0.0, %v331
      %v333 = vpop.f32.mrf.mxu0
      %v334 = vpop.f32.mrf.mxu0
      %v335 = vadd.f32 0.0, %v334
      %v336 = vpop.f32.mrf.mxu0
      %337 = vdwg.mxu0
      %v342 = vunpack.c.l.b16 %v262
      %v343 = vunpack.c.l.b16 %v263
      %v344 = vunpack.c.l.b16 %v264
      %v345 = vunpack.c.l.b16 %v265
      %v346 = vpack.c.b16 %v343, %v342
      %v347 = vpack.c.b16 %v345, %v344
      %v350 = vunpack.c.l.b16 %v226
      %v351 = vunpack.c.l.b16 %v227
      %v352 = vpack.c.b16 %v351, %v350
      %v355 = vsel %vm282, %v346, 0
      %v358 = vsel %vm282, %v347, 0
      %360 = vmatprep.subr.bf16.mxu0 0
      %361 = vmatpush1.bf16.msra.mxu0 0
      %362 = vmatprep.subr.bf16.mxu0 0
      %363 = vmatpush1.bf16.msra.mxu0 0
      %364 = vmatprep.subr.bf16.mxu0 0
      %365 = vmatpush1.bf16.msra.mxu0 0
      %366 = vmatprep.subr.bf16.mxu0 0
      %367 = vmatpush1.bf16.msra.mxu0 0
      %368 = vmatprep.subr.bf16.mxu0 0
      %369 = vmatpush1.bf16.msra.mxu0 0
      %370 = vmatprep.subr.bf16.mxu0 0
      %371 = vmatpush1.bf16.msra.mxu0 0
      %372 = vmatprep.subr.bf16.mxu0 0
      %373 = vmatpush1.bf16.msra.mxu0 0
      %374 = vmatprep.subr.bf16.mxu0 0
      %375 = vmatpush1.bf16.msra.mxu0 %v352
      %376 = vmatprep.subr.bf16.mxu0 0
      %377 = vmatpush2.bf16.msra.mxu0 0
      %378 = vmatprep.subr.bf16.mxu0 0
      %379 = vmatpush2.bf16.msra.mxu0 0
      %380 = vmatprep.subr.bf16.mxu0 0
      %381 = vmatpush2.bf16.msra.mxu0 0
      %382 = vmatprep.subr.bf16.mxu0 0
      %383 = vmatpush2.bf16.msra.mxu0 0
      %384 = vmatprep.subr.bf16.mxu0 0
      %385 = vmatpush2.bf16.msra.mxu0 0
      %386 = vmatprep.subr.bf16.mxu0 0
      %387 = vmatpush2.bf16.msra.mxu0 0
      %388 = vmatprep.subr.bf16.mxu0 0
      %389 = vmatpush2.bf16.msra.mxu0 0
      %390 = vmatprep.subr.bf16.mxu0 0
      %391 = vmatpush2.bf16.msra.mxu0 0
      %392 = vmatprep.mubr.bf16.mxu0 0
      %393 = vmatmul.mubr.bf16.gmra.mxu0 %v355
      %v394 = vpop.f32.mrf.mxu0
      %v395 = vadd.f32 %v324, %v394
      %v396 = vpop.f32.mrf.mxu0
      %v397 = vpop.f32.mrf.mxu0
      %v398 = vadd.f32 %v327, %v397
      %v399 = vpop.f32.mrf.mxu0
      %400 = vmatprep.mubr.bf16.mxu0 0
      %401 = vmatmul.mubr.bf16.gmra.mxu0 %v358
      %v402 = vpop.f32.mrf.mxu0
      %v403 = vadd.f32 %v332, %v402
      %v404 = vpop.f32.mrf.mxu0
      %v405 = vpop.f32.mrf.mxu0
      %v406 = vadd.f32 %v335, %v405
      %v407 = vpop.f32.mrf.mxu0
      %408 = vdwg.mxu0
      %s409 = scalar_lea.vmem %s1, 32
      %v410 = vld [vmem:[%s409] sm:$0xf]
      %v411 = vld [vmem:[%s409 + $0x4] sm:$0xf]
      %v412 = vld [vmem:[%s409 + $0x8] sm:$0xf]
      %v413 = vld [vmem:[%s409 + $0xc] sm:$0xf]
      %v414 = vpack.c.bf16 %v255, %v254
      %v419 = vunpack.c.l.b16 %v410
      %v420 = vunpack.c.l.b16 %v411
      %v421 = vunpack.c.l.b16 %v412
      %v422 = vunpack.c.l.b16 %v413
      %v423 = vpack.c.b16 %v420, %v419
      %v424 = vpack.c.b16 %v422, %v421
      %v426 = vsel %vm282, %v423, 0
      %v429 = vsel %vm282, %v424, 0
      %431 = vmatprep.subr.bf16.mxu0 0
      %432 = vmatpush1.bf16.msra.mxu0 0
      %433 = vmatprep.subr.bf16.mxu0 0
      %434 = vmatpush1.bf16.msra.mxu0 0
      %435 = vmatprep.subr.bf16.mxu0 0
      %436 = vmatpush1.bf16.msra.mxu0 0
      %437 = vmatprep.subr.bf16.mxu0 0
      %438 = vmatpush1.bf16.msra.mxu0 0
      %439 = vmatprep.subr.bf16.mxu0 0
      %440 = vmatpush1.bf16.msra.mxu0 0
      %441 = vmatprep.subr.bf16.mxu0 0
      %442 = vmatpush1.bf16.msra.mxu0 0
      %443 = vmatprep.subr.bf16.mxu0 0
      %444 = vmatpush1.bf16.msra.mxu0 0
      %445 = vmatprep.subr.bf16.mxu0 0
      %446 = vmatpush1.bf16.msra.mxu0 %v414
      %447 = vmatprep.subr.bf16.mxu0 0
      %448 = vmatpush2.bf16.msra.mxu0 0
      %449 = vmatprep.subr.bf16.mxu0 0
      %450 = vmatpush2.bf16.msra.mxu0 0
      %451 = vmatprep.subr.bf16.mxu0 0
      %452 = vmatpush2.bf16.msra.mxu0 0
      %453 = vmatprep.subr.bf16.mxu0 0
      %454 = vmatpush2.bf16.msra.mxu0 0
      %455 = vmatprep.subr.bf16.mxu0 0
      %456 = vmatpush2.bf16.msra.mxu0 0
      %457 = vmatprep.subr.bf16.mxu0 0
      %458 = vmatpush2.bf16.msra.mxu0 0
      %459 = vmatprep.subr.bf16.mxu0 0
      %460 = vmatpush2.bf16.msra.mxu0 0
      %461 = vmatprep.subr.bf16.mxu0 0
      %462 = vmatpush2.bf16.msra.mxu0 0
      %463 = vmatprep.mubr.bf16.mxu0 0
      %464 = vmatmul.mubr.bf16.gmra.mxu0 %v426
      %v465 = vpop.f32.mrf.mxu0
      %v466 = vadd.f32 0.0, %v465
      %v467 = vpop.f32.mrf.mxu0
      %v468 = vpop.f32.mrf.mxu0
      %v469 = vadd.f32 0.0, %v468
      %v470 = vpop.f32.mrf.mxu0
      %471 = vmatprep.mubr.bf16.mxu0 0
      %472 = vmatmul.mubr.bf16.gmra.mxu0 %v429
      %v473 = vpop.f32.mrf.mxu0
      %v474 = vadd.f32 0.0, %v473
      %v475 = vpop.f32.mrf.mxu0
      %v476 = vpop.f32.mrf.mxu0
      %v477 = vadd.f32 0.0, %v476
      %v478 = vpop.f32.mrf.mxu0
      %479 = vdwg.mxu0
      %v480 = vadd.f32 %v395, %v466
      %v481 = vadd.f32 %v398, %v469
      %v482 = vadd.f32 %v403, %v474
      %v483 = vadd.f32 %v406, %v477
      %s484 = scalar_lea.vmem %s1, 48
      %v485 = vld [vmem:[%s484] sm:$0xf]
      %v486 = vld [vmem:[%s484 + $0x4] sm:$0xf]
      %v487 = vld [vmem:[%s484 + $0x8] sm:$0xf]
      %v488 = vld [vmem:[%s484 + $0xc] sm:$0xf]
      %v489 = vpack.c.bf16 %v261, %v260
      %v494 = vunpack.c.l.b16 %v485
      %v495 = vunpack.c.l.b16 %v486
      %v496 = vunpack.c.l.b16 %v487
      %v497 = vunpack.c.l.b16 %v488
      %v498 = vpack.c.b16 %v495, %v494
      %v499 = vpack.c.b16 %v497, %v496
      %v501 = vsel %vm282, %v498, 0
      %v504 = vsel %vm282, %v499, 0
      %506 = vmatprep.subr.bf16.mxu0 0
      %507 = vmatpush1.bf16.msra.mxu0 0
      %508 = vmatprep.subr.bf16.mxu0 0
      %509 = vmatpush1.bf16.msra.mxu0 0
      %510 = vmatprep.subr.bf16.mxu0 0
      %511 = vmatpush1.bf16.msra.mxu0 0
      %512 = vmatprep.subr.bf16.mxu0 0
      %513 = vmatpush1.bf16.msra.mxu0 0
      %514 = vmatprep.subr.bf16.mxu0 0
      %515 = vmatpush1.bf16.msra.mxu0 0
      %516 = vmatprep.subr.bf16.mxu0 0
      %517 = vmatpush1.bf16.msra.mxu0 0
      %518 = vmatprep.subr.bf16.mxu0 0
      %519 = vmatpush1.bf16.msra.mxu0 0
      %520 = vmatprep.subr.bf16.mxu0 0
      %521 = vmatpush1.bf16.msra.mxu0 %v489
      %522 = vmatprep.subr.bf16.mxu0 0
      %523 = vmatpush2.bf16.msra.mxu0 0
      %524 = vmatprep.subr.bf16.mxu0 0
      %525 = vmatpush2.bf16.msra.mxu0 0
      %526 = vmatprep.subr.bf16.mxu0 0
      %527 = vmatpush2.bf16.msra.mxu0 0
      %528 = vmatprep.subr.bf16.mxu0 0
      %529 = vmatpush2.bf16.msra.mxu0 0
      %530 = vmatprep.subr.bf16.mxu0 0
      %531 = vmatpush2.bf16.msra.mxu0 0
      %532 = vmatprep.subr.bf16.mxu0 0
      %533 = vmatpush2.bf16.msra.mxu0 0
      %534 = vmatprep.subr.bf16.mxu0 0
      %535 = vmatpush2.bf16.msra.mxu0 0
      %536 = vmatprep.subr.bf16.mxu0 0
      %537 = vmatpush2.bf16.msra.mxu0 0
      %538 = vmatprep.mubr.bf16.mxu0 0
      %539 = vmatmul.mubr.bf16.gmra.mxu0 %v501
      %v540 = vpop.f32.mrf.mxu0
      %v541 = vadd.f32 0.0, %v540
      %v542 = vpop.f32.mrf.mxu0
      %v543 = vpop.f32.mrf.mxu0
      %v544 = vadd.f32 0.0, %v543
      %v545 = vpop.f32.mrf.mxu0
      %546 = vmatprep.mubr.bf16.mxu0 0
      %547 = vmatmul.mubr.bf16.gmra.mxu0 %v504
      %v548 = vpop.f32.mrf.mxu0
      %v549 = vadd.f32 0.0, %v548
      %v550 = vpop.f32.mrf.mxu0
      %v551 = vpop.f32.mrf.mxu0
      %v552 = vadd.f32 0.0, %v551
      %v553 = vpop.f32.mrf.mxu0
      %554 = vdwg.mxu0
      %v555 = vadd.f32 %v480, %v541
      %v556 = vadd.f32 %v481, %v544
      %v557 = vadd.f32 %v482, %v549
      %v558 = vadd.f32 %v483, %v552
      %v559 = vld [vmem:[%s2] sm:$0xff]
      %v560 = vld [vmem:[%s2 + $0x8] sm:$0xff]
      %v561 = vld [vmem:[%s2 + $0x10] sm:$0xff]
      %v562 = vld [vmem:[%s2 + $0x18] sm:$0xff]
      %564 = vset.pattern.permute.xlu0 0
      %565 = vperm.xlu0 %564, %v559
      %v566 = vpop.permute.xlu0 %565
      %569 = vset.pattern.permute.xlu0 0
      %570 = vperm.xlu0 %569, %v560
      %v571 = vpop.permute.xlu0 %570
      %574 = vset.pattern.permute.xlu0 0
      %575 = vperm.xlu0 %574, %v561
      %v576 = vpop.permute.xlu0 %575
      %579 = vset.pattern.permute.xlu0 0
      %580 = vperm.xlu0 %579, %v562
      %v581 = vpop.permute.xlu0 %580
      %v583 = vadd.f32 %v555, %v566
      %v584 = vadd.f32 %v556, %v571
      %v585 = vadd.f32 %v557, %v576
      %v586 = vadd.f32 %v558, %v581
      %vm587 = vcmp.ge.f32.partialorder %v583, 0.0
      %vm588 = vcmp.ge.f32.partialorder %v584, 0.0
      %vm589 = vcmp.ge.f32.partialorder %v585, 0.0
      %vm590 = vcmp.ge.f32.partialorder %v586, 0.0
      %v591 = vmul.f32 %v583, 0.01
      %v592 = vmul.f32 %v584, 0.01
      %v593 = vmul.f32 %v585, 0.01
      %v594 = vmul.f32 %v586, 0.01
      %v595 = vsel %vm587, %v583, %v591
      %v596 = vsel %vm588, %v584, %v592
      %v597 = vsel %vm589, %v585, %v593
      %v598 = vsel %vm590, %v586, %v594
      %v599 = vpack.c.bf16 %v596, %v595
      %v600 = vpack.c.bf16 %v598, %v597
      %v603 = vunpack.c.l.b16 %v599
      %v604 = vunpack.c.h.b16 %v599
      %v605 = vunpack.c.l.b16 %v600
      %v606 = vunpack.c.h.b16 %v600
      %v607 = vpack.c.b16 %v603, %v603
      %v608 = vpack.c.b16 %v604, %v604
      %v609 = vpack.c.b16 %v605, %v605
      %v610 = vpack.c.b16 %v606, %v606
      %615 = vst [vmem:[%s224] sm:$0xf] %v607
      %616 = vst [vmem:[%s224 + $0x4] sm:$0xf] %v608
      %617 = vst [vmem:[%s224 + $0x8] sm:$0xf] %v609
      %618 = vst [vmem:[%s224 + $0xc] sm:$0xf] %v610
      %p619 = scmp.lt.s32.totalorder %s16, 1
      %s620 = scalar_select %p619, %s16, 1
      %s621 = smul.addr %s620, 4
      %s622 = smul.addr %s621, 4
      %s623 = scalar_lea.vmem %s5, %s622
      // Predicated region
      $region41: #{a_call__.4} parent=39 // pred_check
        %p624 = pneg %p144
      $region42: #{a_call__.4} parent=39 // pred_check_branch
        %626 = sbr.rel (%p624) target = $region44
      $region43: #{a_call__.4} parent=39 // pred_region
        _
      $region44: #{a_call__.4} parent=39 // pred_fallthru
        _
    $region40: #{a_call__.4} parent=5 // pred_fallthru
      _
    %p627 = scmp.le.s32.totalorder 2, %s11
    // Predicated region
    $region45: #{a_call__.4} parent=5 // pred_check
      %p628 = pneg %p627
    $region46: #{a_call__.4} parent=5 // pred_check_branch
      %630 = sbr.rel (%p628) target = $region48
    $region47: #{a_call__.4} parent=5 // pred_region
      %s631 = ssub.s32 %s11, 2
      // Predicated region
      $region49: #{a_call__.4} parent=47 // pred_check
        %p632 = pneg %p150
      $region50: #{a_call__.4} parent=47 // pred_check_branch
        %634 = sbr.rel (%p632) target = $region52
      $region51: #{a_call__.4} parent=47 // pred_region
        %p635 = scmp.lt.s32.totalorder %s17, 1
        %s636 = scalar_select %p635, %s17, 1
        %s637 = smul.addr %s636, 4
        %s638 = smul.addr %s637, 4
        %s639 = scalar_lea.vmem %s5, %s638
      $region52: #{a_call__.4} parent=47 // pred_fallthru
        _
    $region48: #{a_call__.4} parent=5 // pred_fallthru
      _
  $region6: #{a_call__.4} parent=0 // loop_footer
    %s15 = sadd.s32 1, %s11
  $region7: #{a_call__.4} parent=0 // loop_footer_branch
    %10 = sbr.rel target = $region3
  $region8: #{a_call__.4} parent=0 // loop_exit
    _

// kernel: a_call__.5
$region0: #{a_call__.5}
  #allocation0 [shape = 'u32[]', space=smem, size = 0x4, offset = 0x4, fixed_abs, tag = 'smem constant byte address 0x4 - core index']
  #allocation1 [shape = 'u32[144,128]{1,0:T(1,128)}', space=vmem, size = 0x12000, scoped, tag = 'internal scratch']
  %s0 = inlined_call_operand.vmem [shape: bf16[2,8,512], index: 0, kind: input, shape index: {}]
  %s1 = inlined_call_operand.vmem [shape: bf16[4,4,8], index: 1, kind: input, shape index: {}]
  %s2 = inlined_call_operand.vmem [shape: f32[4,128], index: 2, kind: input, shape index: {}]
  %s3 = inlined_call_operand.vmem [shape: f32[1,512], index: 3, kind: input, shape index: {}]
  %s4 = inlined_call_operand.vmem [shape: f32[1,512], index: 4, kind: input, shape index: {}]
  %s5 = inlined_call_operand.vmem [shape: f32[2,4,512], index: 5, kind: output, shape index: {}]
  %s6 = sld [smem:[#allocation0]]
  $region53: #{a_call__.5} parent=0
    _
  %s8 = ssub.s32 1, %s6
  %s9 = scalar_select 0, %s8, %s6
  loop: start=0, step=1, limit=4
  $region2: #{a_call__.5} parent=0 // loop_pre_header
    _
  $region3: #{a_call__.5} parent=0 // loop_header
    %s11 = sphi 0, %s15
    %p12 = scmp.ge.s32.totalorder %s11, 4
    %s21 = sphi 0, %s23
    %s24 = sphi 0, %s21
    %s25 = sphi 0, %s24
    %s41 = sphi 0, %s25
    %s45 = sphi 0, %s45
    %s47 = sphi 0, %s45
    %s48 = sphi 0, %s47
    %s62 = sphi 0, %s48
    %s66 = sphi 0, %s66
    %s68 = sphi 0, %s66
    %s69 = sphi 0, %s68
    %s83 = sphi 0, %s69
    %s87 = sphi 0, %s87
    %s89 = sphi 0, %s87
    %s90 = sphi 0, %s89
    %s104 = sphi 0, %s90
    %s108 = sphi 0, %s108
    %s110 = sphi 0, %s108
    %s111 = sphi 0, %s110
    %s125 = sphi 0, %s111
    %s131 = sphi 0, %s133
    %s134 = sphi 0, %s131
    %s135 = sphi 0, %s134
    %s151 = sphi 0, %s135
  $region4: #{a_call__.5} parent=0 // loop_header_branch
    %14 = sbr.rel (%p12) target = $region8
  $region5: #{a_call__.5} parent=0 // loop_body
    %s16 = ssub.s32 %s11, 1
    %s17 = ssub.s32 %s11, 2
    %s18 = sadd.s32 %s11, 1
    %s19 = ssub.s32 %s11, %s18
    %p20 = scmp.eq.s32.totalorder %s19, 0
    %s22 = sadd.s32 %s21, 1
    %s23 = scalar_select %p20, %s21, %s22
    %p26 = pneg %p20
    %p27 = scmp.eq.s32.totalorder %s11, 1
    %p28 = por %p26, %p27
    %p29 = scmp.ne.s32.totalorder %s21, %s24
    %p30 = scmp.eq.s32.totalorder %s11, 0
    %p31 = por %p29, %p30
    %p32 = scmp.ne.s32.totalorder %s21, %s24
    %p33 = scmp.eq.s32.totalorder %s16, 1
    %p34 = por %p32, %p33
    %p35 = scmp.ne.s32.totalorder %s24, %s25
    %p36 = scmp.eq.s32.totalorder %s16, 0
    %p37 = por %p35, %p36
    %p38 = scmp.ne.s32.totalorder %s24, %s25
    %p39 = scmp.eq.s32.totalorder %s17, 1
    %p40 = por %p38, %p39
    %p42 = scmp.ne.s32.totalorder %s25, %s41
    %p43 = scmp.eq.s32.totalorder %s17, 0
    %p44 = por %p42, %p43
    %s46 = sadd.s32 %s45, 1
    %p49 = scmp.eq.s32.totalorder %s11, 1
    %p50 = scmp.ne.s32.totalorder %s45, %s47
    %p51 = scmp.eq.s32.totalorder %s11, 0
    %p52 = por %p50, %p51
    %p53 = scmp.ne.s32.totalorder %s45, %s47
    %p54 = scmp.eq.s32.totalorder %s16, 1
    %p55 = por %p53, %p54
    %p56 = scmp.ne.s32.totalorder %s47, %s48
    %p57 = scmp.eq.s32.totalorder %s16, 0
    %p58 = por %p56, %p57
    %p59 = scmp.ne.s32.totalorder %s47, %s48
    %p60 = scmp.eq.s32.totalorder %s17, 1
    %p61 = por %p59, %p60
    %p63 = scmp.ne.s32.totalorder %s48, %s62
    %p64 = scmp.eq.s32.totalorder %s17, 0
    %p65 = por %p63, %p64
    %s67 = sadd.s32 %s66, 1
    %p70 = scmp.eq.s32.totalorder %s11, 1
    %p71 = scmp.ne.s32.totalorder %s66, %s68
    %p72 = scmp.eq.s32.totalorder %s11, 0
    %p73 = por %p71, %p72
    %p74 = scmp.ne.s32.totalorder %s66, %s68
    %p75 = scmp.eq.s32.totalorder %s16, 1
    %p76 = por %p74, %p75
    %p77 = scmp.ne.s32.totalorder %s68, %s69
    %p78 = scmp.eq.s32.totalorder %s16, 0
    %p79 = por %p77, %p78
    %p80 = scmp.ne.s32.totalorder %s68, %s69
    %p81 = scmp.eq.s32.totalorder %s17, 1
    %p82 = por %p80, %p81
    %p84 = scmp.ne.s32.totalorder %s69, %s83
    %p85 = scmp.eq.s32.totalorder %s17, 0
    %p86 = por %p84, %p85
    %s88 = sadd.s32 %s87, 1
    %p91 = scmp.eq.s32.totalorder %s11, 1
    %p92 = scmp.ne.s32.totalorder %s87, %s89
    %p93 = scmp.eq.s32.totalorder %s11, 0
    %p94 = por %p92, %p93
    %p95 = scmp.ne.s32.totalorder %s87, %s89
    %p96 = scmp.eq.s32.totalorder %s16, 1
    %p97 = por %p95, %p96
    %p98 = scmp.ne.s32.totalorder %s89, %s90
    %p99 = scmp.eq.s32.totalorder %s16, 0
    %p100 = por %p98, %p99
    %p101 = scmp.ne.s32.totalorder %s89, %s90
    %p102 = scmp.eq.s32.totalorder %s17, 1
    %p103 = por %p101, %p102
    %p105 = scmp.ne.s32.totalorder %s90, %s104
    %p106 = scmp.eq.s32.totalorder %s17, 0
    %p107 = por %p105, %p106
    %s109 = sadd.s32 %s108, 1
    %p112 = scmp.eq.s32.totalorder %s11, 1
    %p113 = scmp.ne.s32.totalorder %s108, %s110
    %p114 = scmp.eq.s32.totalorder %s11, 0
    %p115 = por %p113, %p114
    %p116 = scmp.ne.s32.totalorder %s108, %s110
    %p117 = scmp.eq.s32.totalorder %s16, 1
    %p118 = por %p116, %p117
    %p119 = scmp.ne.s32.totalorder %s110, %s111
    %p120 = scmp.eq.s32.totalorder %s16, 0
    %p121 = por %p119, %p120
    %p122 = scmp.ne.s32.totalorder %s110, %s111
    %p123 = scmp.eq.s32.totalorder %s17, 1
    %p124 = por %p122, %p123
    %p126 = scmp.ne.s32.totalorder %s111, %s125
    %p127 = scmp.eq.s32.totalorder %s17, 0
    %p128 = por %p126, %p127
    %s129 = ssub.s32 %s11, %s18
    %p130 = scmp.eq.s32.totalorder %s129, 0
    %s132 = sadd.s32 %s131, 1
    %s133 = scalar_select %p130, %s131, %s132
    %p136 = pneg %p130
    %p137 = scmp.eq.s32.totalorder %s11, 1
    %p138 = por %p136, %p137
    %p139 = scmp.ne.s32.totalorder %s131, %s134
    %p140 = scmp.eq.s32.totalorder %s11, 0
    %p141 = por %p139, %p140
    %p142 = scmp.ne.s32.totalorder %s131, %s134
    %p143 = scmp.eq.s32.totalorder %s16, 1
    %p144 = por %p142, %p143
    %p145 = scmp.ne.s32.totalorder %s134, %s135
    %p146 = scmp.eq.s32.totalorder %s16, 0
    %p147 = por %p145, %p146
    %p148 = scmp.ne.s32.totalorder %s134, %s135
    %p149 = scmp.eq.s32.totalorder %s17, 1
    %p150 = por %p148, %p149
    %p152 = scmp.ne.s32.totalorder %s135, %s151
    %p153 = scmp.eq.s32.totalorder %s17, 0
    %p154 = por %p152, %p153
    %p155 = scmp.le.s32.totalorder 1, %s11
    %p156 = scmp.lt.s32.totalorder %s11, 3
    %p157 = pnand %p155, %p156
    %p158 = pneg %p157
    // Predicated region
    $region9: #{a_call__.5} parent=5 // pred_check
      _
    $region10: #{a_call__.5} parent=5 // pred_check_branch
      %160 = sbr.rel (%p157) target = $region12
    $region11: #{a_call__.5} parent=5 // pred_region
      %s161 = ssub.s32 %s11, 1
      // Predicated region
      $region13: #{a_call__.5} parent=11 // pred_check
        %p162 = pneg %p58
      $region14: #{a_call__.5} parent=11 // pred_check_branch
        %164 = sbr.rel (%p162) target = $region16
      $region15: #{a_call__.5} parent=11 // pred_region
        _
      $region16: #{a_call__.5} parent=11 // pred_fallthru
        _
      // Predicated region
      $region17: #{a_call__.5} parent=11 // pred_check
        %p165 = pneg %p79
      $region18: #{a_call__.5} parent=11 // pred_check_branch
        %167 = sbr.rel (%p165) target = $region20
      $region19: #{a_call__.5} parent=11 // pred_region
        _
      $region20: #{a_call__.5} parent=11 // pred_fallthru
        _
      // Predicated region
      $region21: #{a_call__.5} parent=11 // pred_check
        %p168 = pneg %p100
      $region22: #{a_call__.5} parent=11 // pred_check_branch
        %170 = sbr.rel (%p168) target = $region24
      $region23: #{a_call__.5} parent=11 // pred_region
        _
      $region24: #{a_call__.5} parent=11 // pred_fallthru
        _
      // Predicated region
      $region25: #{a_call__.5} parent=11 // pred_check
        %p171 = pneg %p121
      $region26: #{a_call__.5} parent=11 // pred_check_branch
        %173 = sbr.rel (%p171) target = $region28
      $region27: #{a_call__.5} parent=11 // pred_region
        _
      $region28: #{a_call__.5} parent=11 // pred_fallthru
        _
    $region12: #{a_call__.5} parent=5 // pred_fallthru
      _
    %p174 = scmp.lt.s32.totalorder %s11, 2
    // Predicated region
    $region29: #{a_call__.5} parent=5 // pred_check
      %p175 = pneg %p174
    $region30: #{a_call__.5} parent=5 // pred_check_branch
      %177 = sbr.rel (%p175) target = $region32
    $region31: #{a_call__.5} parent=5 // pred_region
      // Predicated region
      $region33: #{a_call__.5} parent=31 // pred_check
        %p178 = pneg %p31
      $region34: #{a_call__.5} parent=31 // pred_check_branch
        %180 = sbr.rel (%p178) target = $region36
      $region35: #{a_call__.5} parent=31 // pred_region
        %p181 = scmp.lt.s32.totalorder %s11, 1
        %s182 = scalar_select %p181, %s11, 1
        %s183 = smul.addr %s182, 4
        %s184 = smul.addr %s183, 4
        %s185 = scalar_lea.vmem %s0, %s184
      $region36: #{a_call__.5} parent=31 // pred_fallthru
        _
    $region32: #{a_call__.5} parent=5 // pred_fallthru
      _
    %p186 = scmp.le.s32.totalorder 1, %s11
    %p187 = scmp.lt.s32.totalorder %s11, 3
    %p188 = pnand %p186, %p187
    %p189 = pneg %p188
    // Predicated region
    $region37: #{a_call__.5} parent=5 // pred_check
      _
    $region38: #{a_call__.5} parent=5 // pred_check_branch
      %191 = sbr.rel (%p188) target = $region40
    $region39: #{a_call__.5} parent=5 // pred_region
      %s192 = ssub.s32 %s11, 1
      %p193 = scmp.lt.s32.totalorder %s16, 1
      %s194 = scalar_select %p193, %s16, 1
      %s195 = smul.addr %s194, 4
      %s196 = smul.addr %s195, 4
      %s197 = scalar_lea.vmem %s0, %s196
      %p198 = pneg %p37
      %p199 = pneg %p34
      %p200 = pneg %p58
      %p201 = pneg %p55
      %p202 = pneg %p79
      %p203 = pneg %p76
      %p204 = pneg %p100
      %p205 = pneg %p97
      %p206 = pneg %p121
      %p207 = pneg %p118
      %p208 = pneg %p147
      %p209 = pneg %p144
      %p210 = scmp.lt.s32.totalorder %s16, 1
      %s211 = scalar_select %p210, %s16, 1
      %s212 = smul.addr %s211, 4
      %s213 = smul.addr %s212, 4
      %s214 = scalar_lea.vmem %s5, %s213
      %p215 = scmp.lt.s32.totalorder %s16, 1
      %s216 = scalar_select %p215, %s16, 1
      %s217 = smul.addr %s216, 4
      %s218 = smul.addr %s217, 4
      %s219 = scalar_lea.vmem %s0, %s218
      %p220 = scmp.lt.s32.totalorder %s16, 1
      %s221 = scalar_select %p220, %s16, 1
      %s222 = smul.addr %s221, 4
      %s223 = smul.addr %s222, 4
      %s224 = scalar_lea.vmem %s5, %s223
      %v226 = vld [vmem:[%s219] sm:$0xff]
      %v227 = vld [vmem:[%s219 + $0x8] sm:$0xff]
      %v228 = vunpack.c.l.bf16 %v226
      %v229 = vunpack.c.h.bf16 %v226
      %v230 = vunpack.c.l.bf16 %v227
      %v231 = vunpack.c.h.bf16 %v227
      %v232 = vld [vmem:[%s3] sm:$0xf]
      %v233 = vld [vmem:[%s4] sm:$0xf]
      %234 = vrot.lane.b32.xlu0 %v228, 96
      %v235 = vpop.permute.xlu0 %234
      %236 = vrot.lane.b32.xlu0 %v229, 96
      %v237 = vpop.permute.xlu0 %236
      %238 = vrot.lane.b32.xlu0 %v230, 96
      %v239 = vpop.permute.xlu0 %238
      %240 = vrot.lane.b32.xlu0 %v231, 96
      %v241 = vpop.permute.xlu0 %240
      %v242 = vlaneseq
      %v243 = vand.u32 %v242, 127
      %vm244 = vcmp.lt.s32.totalorder %v243, 96
      %v245 = vsel %vm244, %v239, %v241
      %v246 = vsel %vm244, %v237, %v239
      %v247 = vsel %vm244, %v235, %v237
      %v248 = vsel %vm244, %v241, %v235
      %v250 = vlaneseq
      %v251 = vshrl.u32 %v250, 7
      %v252 = vsub.s32 0, %v251
      %v253 = vrot.slane %v233, %v252
      %v254 = vlaneseq
      %v255 = vshrl.u32 %v254, 7
      %v256 = vsub.s32 1, %v255
      %v257 = vrot.slane %v233, %v256
      %v258 = vlaneseq
      %v259 = vshrl.u32 %v258, 7
      %v260 = vsub.s32 2, %v259
      %v261 = vrot.slane %v233, %v260
      %v262 = vlaneseq
      %v263 = vshrl.u32 %v262, 7
      %v264 = vsub.s32 3, %v263
      %v265 = vrot.slane %v233, %v264
      %v270 = vmul.f32 %v247, %v253
      %v271 = vmul.f32 %v246, %v257
      %v272 = vmul.f32 %v245, %v261
      %v273 = vmul.f32 %v248, %v265
      %274 = vrot.lane.b32.xlu0 %v228, 127
      %v275 = vpop.permute.xlu0 %274
      %276 = vrot.lane.b32.xlu0 %v229, 127
      %v277 = vpop.permute.xlu0 %276
      %278 = vrot.lane.b32.xlu0 %v230, 127
      %v279 = vpop.permute.xlu0 %278
      %280 = vrot.lane.b32.xlu0 %v231, 127
      %v281 = vpop.permute.xlu0 %280
      %vm282 = vcmp.lt.s32.totalorder %v243, 127
      %v283 = vsel %vm282, %v279, %v281
      %v284 = vsel %vm282, %v277, %v279
      %v285 = vsel %vm282, %v275, %v277
      %v286 = vsel %vm282, %v281, %v275
      %v288 = vlaneseq
      %v289 = vshrl.u32 %v288, 7
      %v290 = vsub.s32 0, %v289
      %v291 = vrot.slane %v232, %v290
      %v292 = vlaneseq
      %v293 = vshrl.u32 %v292, 7
      %v294 = vsub.s32 1, %v293
      %v295 = vrot.slane %v232, %v294
      %v296 = vlaneseq
      %v297 = vshrl.u32 %v296, 7
      %v298 = vsub.s32 2, %v297
      %v299 = vrot.slane %v232, %v298
      %v300 = vlaneseq
      %v301 = vshrl.u32 %v300, 7
      %v302 = vsub.s32 3, %v301
      %v303 = vrot.slane %v232, %v302
      %v308 = vmul.f32 %v285, %v291
      %v309 = vmul.f32 %v284, %v295
      %v310 = vmul.f32 %v283, %v299
      %v311 = vmul.f32 %v286, %v303
      %312 = vrot.lane.b32.xlu0 %v270, 127
      %v313 = vpop.permute.xlu0 %312
      %314 = vrot.lane.b32.xlu0 %v271, 127
      %v315 = vpop.permute.xlu0 %314
      %316 = vrot.lane.b32.xlu0 %v272, 127
      %v317 = vpop.permute.xlu0 %316
      %318 = vrot.lane.b32.xlu0 %v273, 127
      %v319 = vpop.permute.xlu0 %318
      %v320 = vsel %vm282, %v317, %v319
      %v321 = vsel %vm282, %v315, %v317
      %v322 = vsel %vm282, %v313, %v315
      %v323 = vsel %vm282, %v319, %v313
      %v324 = vmul.f32 %v322, %v291
      %v325 = vmul.f32 %v321, %v295
      %v326 = vmul.f32 %v320, %v299
      %v327 = vmul.f32 %v323, %v303
      %v328 = vld [vmem:[%s1] sm:$0x3]
      %s329 = scalar_lea.vmem %s1, 2
      %v330 = vld [vmem:[%s329] sm:$0x3]
      %v331 = vpack.c.bf16 %v270, %v270
      %v332 = vpack.c.bf16 %v271, %v271
      %v333 = vpack.c.bf16 %v272, %v272
      %v334 = vpack.c.bf16 %v273, %v273
      %vm335 = vcmask 64512
      %v337 = vsel %vm335, %v330, 0
      %vm339 = vcmask 1043456
      %v341 = vsel %vm339, %v331, 0
      %v344 = vsel %vm339, %v332, 0
      %v347 = vsel %vm339, %v333, 0
      %v350 = vsel %vm339, %v334, 0
      %352 = vmatprep.subr.bf16.mxu0 0
      %353 = vmatpush1.bf16.msra.mxu0 0
      %354 = vmatprep.subr.bf16.mxu0 0
      %355 = vmatpush1.bf16.msra.mxu0 0
      %356 = vmatprep.subr.bf16.mxu0 0
      %357 = vmatpush1.bf16.msra.mxu0 0
      %358 = vmatprep.subr.bf16.mxu0 0
      %359 = vmatpush1.bf16.msra.mxu0 0
      %360 = vmatprep.subr.bf16.mxu0 0
      %361 = vmatpush1.bf16.msra.mxu0 0
      %362 = vmatprep.subr.bf16.mxu0 0
      %363 = vmatpush1.bf16.msra.mxu0 0
      %364 = vmatprep.subr.bf16.mxu0 0
      %365 = vmatpush1.bf16.msra.mxu0 0
      %366 = vmatprep.subr.bf16.mxu0 %v344
      %367 = vmatpush1.bf16.msra.mxu0 %v341
      %368 = vmatprep.subr.bf16.mxu0 0
      %369 = vmatpush2.bf16.msra.mxu0 0
      %370 = vmatprep.subr.bf16.mxu0 0
      %371 = vmatpush2.bf16.msra.mxu0 0
      %372 = vmatprep.subr.bf16.mxu0 0
      %373 = vmatpush2.bf16.msra.mxu0 0
      %374 = vmatprep.subr.bf16.mxu0 0
      %375 = vmatpush2.bf16.msra.mxu0 0
      %376 = vmatprep.subr.bf16.mxu0 0
      %377 = vmatpush2.bf16.msra.mxu0 0
      %378 = vmatprep.subr.bf16.mxu0 0
      %379 = vmatpush2.bf16.msra.mxu0 0
      %380 = vmatprep.subr.bf16.mxu0 0
      %381 = vmatpush2.bf16.msra.mxu0 0
      %382 = vmatprep.subr.bf16.mxu0 0
      %383 = vmatpush2.bf16.msra.mxu0 0
      %384 = vmatprep.mubr.bf16.mxu0 0
      %385 = vmatmul.mubr.bf16.gmra.mxu0 %v337
      %v386 = vpop.f32.mrf.mxu0
      %v387 = vadd.f32 0.0, %v386
      %v388 = vpop.f32.mrf.mxu0
      %v389 = vadd.f32 0.0, %v388
      %v390 = vpop.f32.mrf.mxu0
      %v391 = vpop.f32.mrf.mxu0
      %392 = vdwg.mxu0
      %393 = vmatprep.subr.bf16.mxu0 0
      %394 = vmatpush1.bf16.msra.mxu0 0
      %395 = vmatprep.subr.bf16.mxu0 0
      %396 = vmatpush1.bf16.msra.mxu0 0
      %397 = vmatprep.subr.bf16.mxu0 0
      %398 = vmatpush1.bf16.msra.mxu0 0
      %399 = vmatprep.subr.bf16.mxu0 0
      %400 = vmatpush1.bf16.msra.mxu0 0
      %401 = vmatprep.subr.bf16.mxu0 0
      %402 = vmatpush1.bf16.msra.mxu0 0
      %403 = vmatprep.subr.bf16.mxu0 0
      %404 = vmatpush1.bf16.msra.mxu0 0
      %405 = vmatprep.subr.bf16.mxu0 0
      %406 = vmatpush1.bf16.msra.mxu0 0
      %407 = vmatprep.subr.bf16.mxu0 %v350
      %408 = vmatpush1.bf16.msra.mxu0 %v347
      %409 = vmatprep.subr.bf16.mxu0 0
      %410 = vmatpush2.bf16.msra.mxu0 0
      %411 = vmatprep.subr.bf16.mxu0 0
      %412 = vmatpush2.bf16.msra.mxu0 0
      %413 = vmatprep.subr.bf16.mxu0 0
      %414 = vmatpush2.bf16.msra.mxu0 0
      %415 = vmatprep.subr.bf16.mxu0 0
      %416 = vmatpush2.bf16.msra.mxu0 0
      %417 = vmatprep.subr.bf16.mxu0 0
      %418 = vmatpush2.bf16.msra.mxu0 0
      %419 = vmatprep.subr.bf16.mxu0 0
      %420 = vmatpush2.bf16.msra.mxu0 0
      %421 = vmatprep.subr.bf16.mxu0 0
      %422 = vmatpush2.bf16.msra.mxu0 0
      %423 = vmatprep.subr.bf16.mxu0 0
      %424 = vmatpush2.bf16.msra.mxu0 0
      %425 = vmatprep.mubr.bf16.mxu0 0
      %426 = vmatmul.mubr.bf16.gmra.mxu0 %v337
      %v427 = vpop.f32.mrf.mxu0
      %v428 = vadd.f32 0.0, %v427
      %v429 = vpop.f32.mrf.mxu0
      %v430 = vadd.f32 0.0, %v429
      %v431 = vpop.f32.mrf.mxu0
      %v432 = vpop.f32.mrf.mxu0
      %433 = vdwg.mxu0
      %v436 = vunpack.c.l.b16 %v226
      %v437 = vunpack.c.h.b16 %v226
      %v438 = vunpack.c.l.b16 %v227
      %v439 = vunpack.c.h.b16 %v227
      %v440 = vpack.c.b16 %v436, %v436
      %v441 = vpack.c.b16 %v437, %v437
      %v442 = vpack.c.b16 %v438, %v438
      %v443 = vpack.c.b16 %v439, %v439
      %v445 = vsel %vm335, %v328, 0
      %v448 = vsel %vm339, %v440, 0
      %v451 = vsel %vm339, %v441, 0
      %v454 = vsel %vm339, %v442, 0
      %v457 = vsel %vm339, %v443, 0
      %459 = vmatprep.subr.bf16.mxu0 0
      %460 = vmatpush1.bf16.msra.mxu0 0
      %461 = vmatprep.subr.bf16.mxu0 0
      %462 = vmatpush1.bf16.msra.mxu0 0
      %463 = vmatprep.subr.bf16.mxu0 0
      %464 = vmatpush1.bf16.msra.mxu0 0
      %465 = vmatprep.subr.bf16.mxu0 0
      %466 = vmatpush1.bf16.msra.mxu0 0
      %467 = vmatprep.subr.bf16.mxu0 0
      %468 = vmatpush1.bf16.msra.mxu0 0
      %469 = vmatprep.subr.bf16.mxu0 0
      %470 = vmatpush1.bf16.msra.mxu0 0
      %471 = vmatprep.subr.bf16.mxu0 0
      %472 = vmatpush1.bf16.msra.mxu0 0
      %473 = vmatprep.subr.bf16.mxu0 %v451
      %474 = vmatpush1.bf16.msra.mxu0 %v448
      %475 = vmatprep.subr.bf16.mxu0 0
      %476 = vmatpush2.bf16.msra.mxu0 0
      %477 = vmatprep.subr.bf16.mxu0 0
      %478 = vmatpush2.bf16.msra.mxu0 0
      %479 = vmatprep.subr.bf16.mxu0 0
      %480 = vmatpush2.bf16.msra.mxu0 0
      %481 = vmatprep.subr.bf16.mxu0 0
      %482 = vmatpush2.bf16.msra.mxu0 0
      %483 = vmatprep.subr.bf16.mxu0 0
      %484 = vmatpush2.bf16.msra.mxu0 0
      %485 = vmatprep.subr.bf16.mxu0 0
      %486 = vmatpush2.bf16.msra.mxu0 0
      %487 = vmatprep.subr.bf16.mxu0 0
      %488 = vmatpush2.bf16.msra.mxu0 0
      %489 = vmatprep.subr.bf16.mxu0 0
      %490 = vmatpush2.bf16.msra.mxu0 0
      %491 = vmatprep.mubr.bf16.mxu0 0
      %492 = vmatmul.mubr.bf16.gmra.mxu0 %v445
      %v493 = vpop.f32.mrf.mxu0
      %v494 = vadd.f32 %v387, %v493
      %v495 = vpop.f32.mrf.mxu0
      %v496 = vadd.f32 %v389, %v495
      %v497 = vpop.f32.mrf.mxu0
      %v498 = vpop.f32.mrf.mxu0
      %499 = vdwg.mxu0
      %500 = vmatprep.subr.bf16.mxu0 0
      %501 = vmatpush1.bf16.msra.mxu0 0
      %502 = vmatprep.subr.bf16.mxu0 0
      %503 = vmatpush1.bf16.msra.mxu0 0
      %504 = vmatprep.subr.bf16.mxu0 0
      %505 = vmatpush1.bf16.msra.mxu0 0
      %506 = vmatprep.subr.bf16.mxu0 0
      %507 = vmatpush1.bf16.msra.mxu0 0
      %508 = vmatprep.subr.bf16.mxu0 0
      %509 = vmatpush1.bf16.msra.mxu0 0
      %510 = vmatprep.subr.bf16.mxu0 0
      %511 = vmatpush1.bf16.msra.mxu0 0
      %512 = vmatprep.subr.bf16.mxu0 0
      %513 = vmatpush1.bf16.msra.mxu0 0
      %514 = vmatprep.subr.bf16.mxu0 %v457
      %515 = vmatpush1.bf16.msra.mxu0 %v454
      %516 = vmatprep.subr.bf16.mxu0 0
      %517 = vmatpush2.bf16.msra.mxu0 0
      %518 = vmatprep.subr.bf16.mxu0 0
      %519 = vmatpush2.bf16.msra.mxu0 0
      %520 = vmatprep.subr.bf16.mxu0 0
      %521 = vmatpush2.bf16.msra.mxu0 0
      %522 = vmatprep.subr.bf16.mxu0 0
      %523 = vmatpush2.bf16.msra.mxu0 0
      %524 = vmatprep.subr.bf16.mxu0 0
      %525 = vmatpush2.bf16.msra.mxu0 0
      %526 = vmatprep.subr.bf16.mxu0 0
      %527 = vmatpush2.bf16.msra.mxu0 0
      %528 = vmatprep.subr.bf16.mxu0 0
      %529 = vmatpush2.bf16.msra.mxu0 0
      %530 = vmatprep.subr.bf16.mxu0 0
      %531 = vmatpush2.bf16.msra.mxu0 0
      %532 = vmatprep.mubr.bf16.mxu0 0
      %533 = vmatmul.mubr.bf16.gmra.mxu0 %v445
      %v534 = vpop.f32.mrf.mxu0
      %v535 = vadd.f32 %v428, %v534
      %v536 = vpop.f32.mrf.mxu0
      %v537 = vadd.f32 %v430, %v536
      %v538 = vpop.f32.mrf.mxu0
      %v539 = vpop.f32.mrf.mxu0
      %540 = vdwg.mxu0
      %s541 = scalar_lea.vmem %s1, 4
      %v542 = vld [vmem:[%s541] sm:$0x3]
      %v543 = vpack.c.bf16 %v308, %v308
      %v544 = vpack.c.bf16 %v309, %v309
      %v545 = vpack.c.bf16 %v310, %v310
      %v546 = vpack.c.bf16 %v311, %v311
      %v548 = vsel %vm335, %v542, 0
      %v551 = vsel %vm339, %v543, 0
      %v554 = vsel %vm339, %v544, 0
      %v557 = vsel %vm339, %v545, 0
      %v560 = vsel %vm339, %v546, 0
      %562 = vmatprep.subr.bf16.mxu0 0
      %563 = vmatpush1.bf16.msra.mxu0 0
      %564 = vmatprep.subr.bf16.mxu0 0
      %565 = vmatpush1.bf16.msra.mxu0 0
      %566 = vmatprep.subr.bf16.mxu0 0
      %567 = vmatpush1.bf16.msra.mxu0 0
      %568 = vmatprep.subr.bf16.mxu0 0
      %569 = vmatpush1.bf16.msra.mxu0 0
      %570 = vmatprep.subr.bf16.mxu0 0
      %571 = vmatpush1.bf16.msra.mxu0 0
      %572 = vmatprep.subr.bf16.mxu0 0
      %573 = vmatpush1.bf16.msra.mxu0 0
      %574 = vmatprep.subr.bf16.mxu0 0
      %575 = vmatpush1.bf16.msra.mxu0 0
      %576 = vmatprep.subr.bf16.mxu0 %v554
      %577 = vmatpush1.bf16.msra.mxu0 %v551
      %578 = vmatprep.subr.bf16.mxu0 0
      %579 = vmatpush2.bf16.msra.mxu0 0
      %580 = vmatprep.subr.bf16.mxu0 0
      %581 = vmatpush2.bf16.msra.mxu0 0
      %582 = vmatprep.subr.bf16.mxu0 0
      %583 = vmatpush2.bf16.msra.mxu0 0
      %584 = vmatprep.subr.bf16.mxu0 0
      %585 = vmatpush2.bf16.msra.mxu0 0
      %586 = vmatprep.subr.bf16.mxu0 0
      %587 = vmatpush2.bf16.msra.mxu0 0
      %588 = vmatprep.subr.bf16.mxu0 0
      %589 = vmatpush2.bf16.msra.mxu0 0
      %590 = vmatprep.subr.bf16.mxu0 0
      %591 = vmatpush2.bf16.msra.mxu0 0
      %592 = vmatprep.subr.bf16.mxu0 0
      %593 = vmatpush2.bf16.msra.mxu0 0
      %594 = vmatprep.mubr.bf16.mxu0 0
      %595 = vmatmul.mubr.bf16.gmra.mxu0 %v548
      %v596 = vpop.f32.mrf.mxu0
      %v597 = vadd.f32 0.0, %v596
      %v598 = vpop.f32.mrf.mxu0
      %v599 = vadd.f32 0.0, %v598
      %v600 = vpop.f32.mrf.mxu0
      %v601 = vpop.f32.mrf.mxu0
      %602 = vdwg.mxu0
      %603 = vmatprep.subr.bf16.mxu0 0
      %604 = vmatpush1.bf16.msra.mxu0 0
      %605 = vmatprep.subr.bf16.mxu0 0
      %606 = vmatpush1.bf16.msra.mxu0 0
      %607 = vmatprep.subr.bf16.mxu0 0
      %608 = vmatpush1.bf16.msra.mxu0 0
      %609 = vmatprep.subr.bf16.mxu0 0
      %610 = vmatpush1.bf16.msra.mxu0 0
      %611 = vmatprep.subr.bf16.mxu0 0
      %612 = vmatpush1.bf16.msra.mxu0 0
      %613 = vmatprep.subr.bf16.mxu0 0
      %614 = vmatpush1.bf16.msra.mxu0 0
      %615 = vmatprep.subr.bf16.mxu0 0
      %616 = vmatpush1.bf16.msra.mxu0 0
      %617 = vmatprep.subr.bf16.mxu0 %v560
      %618 = vmatpush1.bf16.msra.mxu0 %v557
      %619 = vmatprep.subr.bf16.mxu0 0
      %620 = vmatpush2.bf16.msra.mxu0 0
      %621 = vmatprep.subr.bf16.mxu0 0
      %622 = vmatpush2.bf16.msra.mxu0 0
      %623 = vmatprep.subr.bf16.mxu0 0
      %624 = vmatpush2.bf16.msra.mxu0 0
      %625 = vmatprep.subr.bf16.mxu0 0
      %626 = vmatpush2.bf16.msra.mxu0 0
      %627 = vmatprep.subr.bf16.mxu0 0
      %628 = vmatpush2.bf16.msra.mxu0 0
      %629 = vmatprep.subr.bf16.mxu0 0
      %630 = vmatpush2.bf16.msra.mxu0 0
      %631 = vmatprep.subr.bf16.mxu0 0
      %632 = vmatpush2.bf16.msra.mxu0 0
      %633 = vmatprep.subr.bf16.mxu0 0
      %634 = vmatpush2.bf16.msra.mxu0 0
      %635 = vmatprep.mubr.bf16.mxu0 0
      %636 = vmatmul.mubr.bf16.gmra.mxu0 %v548
      %v637 = vpop.f32.mrf.mxu0
      %v638 = vadd.f32 0.0, %v637
      %v639 = vpop.f32.mrf.mxu0
      %v640 = vadd.f32 0.0, %v639
      %v641 = vpop.f32.mrf.mxu0
      %v642 = vpop.f32.mrf.mxu0
      %643 = vdwg.mxu0
      %v644 = vadd.f32 %v494, %v597
      %v645 = vadd.f32 %v496, %v599
      %v646 = vadd.f32 %v535, %v638
      %v647 = vadd.f32 %v537, %v640
      %s648 = scalar_lea.vmem %s1, 6
      %v649 = vld [vmem:[%s648] sm:$0x3]
      %v650 = vpack.c.bf16 %v324, %v324
      %v651 = vpack.c.bf16 %v325, %v325
      %v652 = vpack.c.bf16 %v326, %v326
      %v653 = vpack.c.bf16 %v327, %v327
      %v655 = vsel %vm335, %v649, 0
      %v658 = vsel %vm339, %v650, 0
      %v661 = vsel %vm339, %v651, 0
      %v664 = vsel %vm339, %v652, 0
      %v667 = vsel %vm339, %v653, 0
      %669 = vmatprep.subr.bf16.mxu0 0
      %670 = vmatpush1.bf16.msra.mxu0 0
      %671 = vmatprep.subr.bf16.mxu0 0
      %672 = vmatpush1.bf16.msra.mxu0 0
      %673 = vmatprep.subr.bf16.mxu0 0
      %674 = vmatpush1.bf16.msra.mxu0 0
      %675 = vmatprep.subr.bf16.mxu0 0
      %676 = vmatpush1.bf16.msra.mxu0 0
      %677 = vmatprep.subr.bf16.mxu0 0
      %678 = vmatpush1.bf16.msra.mxu0 0
      %679 = vmatprep.subr.bf16.mxu0 0
      %680 = vmatpush1.bf16.msra.mxu0 0
      %681 = vmatprep.subr.bf16.mxu0 0
      %682 = vmatpush1.bf16.msra.mxu0 0
      %683 = vmatprep.subr.bf16.mxu0 %v661
      %684 = vmatpush1.bf16.msra.mxu0 %v658
      %685 = vmatprep.subr.bf16.mxu0 0
      %686 = vmatpush2.bf16.msra.mxu0 0
      %687 = vmatprep.subr.bf16.mxu0 0
      %688 = vmatpush2.bf16.msra.mxu0 0
      %689 = vmatprep.subr.bf16.mxu0 0
      %690 = vmatpush2.bf16.msra.mxu0 0
      %691 = vmatprep.subr.bf16.mxu0 0
      %692 = vmatpush2.bf16.msra.mxu0 0
      %693 = vmatprep.subr.bf16.mxu0 0
      %694 = vmatpush2.bf16.msra.mxu0 0
      %695 = vmatprep.subr.bf16.mxu0 0
      %696 = vmatpush2.bf16.msra.mxu0 0
      %697 = vmatprep.subr.bf16.mxu0 0
      %698 = vmatpush2.bf16.msra.mxu0 0
      %699 = vmatprep.subr.bf16.mxu0 0
      %700 = vmatpush2.bf16.msra.mxu0 0
      %701 = vmatprep.mubr.bf16.mxu0 0
      %702 = vmatmul.mubr.bf16.gmra.mxu0 %v655
      %v703 = vpop.f32.mrf.mxu0
      %v704 = vadd.f32 0.0, %v703
      %v705 = vpop.f32.mrf.mxu0
      %v706 = vadd.f32 0.0, %v705
      %v707 = vpop.f32.mrf.mxu0
      %v708 = vpop.f32.mrf.mxu0
      %709 = vdwg.mxu0
      %710 = vmatprep.subr.bf16.mxu0 0
      %711 = vmatpush1.bf16.msra.mxu0 0
      %712 = vmatprep.subr.bf16.mxu0 0
      %713 = vmatpush1.bf16.msra.mxu0 0
      %714 = vmatprep.subr.bf16.mxu0 0
      %715 = vmatpush1.bf16.msra.mxu0 0
      %716 = vmatprep.subr.bf16.mxu0 0
      %717 = vmatpush1.bf16.msra.mxu0 0
      %718 = vmatprep.subr.bf16.mxu0 0
      %719 = vmatpush1.bf16.msra.mxu0 0
      %720 = vmatprep.subr.bf16.mxu0 0
      %721 = vmatpush1.bf16.msra.mxu0 0
      %722 = vmatprep.subr.bf16.mxu0 0
      %723 = vmatpush1.bf16.msra.mxu0 0
      %724 = vmatprep.subr.bf16.mxu0 %v667
      %725 = vmatpush1.bf16.msra.mxu0 %v664
      %726 = vmatprep.subr.bf16.mxu0 0
      %727 = vmatpush2.bf16.msra.mxu0 0
      %728 = vmatprep.subr.bf16.mxu0 0
      %729 = vmatpush2.bf16.msra.mxu0 0
      %730 = vmatprep.subr.bf16.mxu0 0
      %731 = vmatpush2.bf16.msra.mxu0 0
      %732 = vmatprep.subr.bf16.mxu0 0
      %733 = vmatpush2.bf16.msra.mxu0 0
      %734 = vmatprep.subr.bf16.mxu0 0
      %735 = vmatpush2.bf16.msra.mxu0 0
      %736 = vmatprep.subr.bf16.mxu0 0
      %737 = vmatpush2.bf16.msra.mxu0 0
      %738 = vmatprep.subr.bf16.mxu0 0
      %739 = vmatpush2.bf16.msra.mxu0 0
      %740 = vmatprep.subr.bf16.mxu0 0
      %741 = vmatpush2.bf16.msra.mxu0 0
      %742 = vmatprep.mubr.bf16.mxu0 0
      %743 = vmatmul.mubr.bf16.gmra.mxu0 %v655
      %v744 = vpop.f32.mrf.mxu0
      %v745 = vadd.f32 0.0, %v744
      %v746 = vpop.f32.mrf.mxu0
      %v747 = vadd.f32 0.0, %v746
      %v748 = vpop.f32.mrf.mxu0
      %v749 = vpop.f32.mrf.mxu0
      %750 = vdwg.mxu0
      %v751 = vadd.f32 %v644, %v704
      %v752 = vadd.f32 %v645, %v706
      %v753 = vadd.f32 %v646, %v745
      %v754 = vadd.f32 %v647, %v747
      %v755 = vld [vmem:[%s2] sm:$0xf]
      %757 = vset.pattern.permute.xlu0 0
      %758 = vperm.xlu0 %757, %v755
      %v759 = vpop.permute.xlu0 %758
      %v761 = vadd.f32 %v751, %v759
      %v762 = vadd.f32 %v752, %v759
      %v763 = vadd.f32 %v753, %v759
      %v764 = vadd.f32 %v754, %v759
      %v765 = vtanh.pop %v761
      %v766 = vtanh.pop %v762
      %v767 = vtanh.pop %v763
      %v768 = vtanh.pop %v764
      %v773 = vcombine.low %v765, %v766
      %v774 = vcombine.low %v767, %v768
      %777 = vst [vmem:[%s224] sm:$0xff] %v773
      %778 = vst [vmem:[%s224 + $0x8] sm:$0xff] %v774
      %p779 = scmp.lt.s32.totalorder %s16, 1
      %s780 = scalar_select %p779, %s16, 1
      %s781 = smul.addr %s780, 4
      %s782 = smul.addr %s781, 4
      %s783 = scalar_lea.vmem %s5, %s782
      // Predicated region
      $region41: #{a_call__.5} parent=39 // pred_check
        %p784 = pneg %p144
      $region42: #{a_call__.5} parent=39 // pred_check_branch
        %786 = sbr.rel (%p784) target = $region44
      $region43: #{a_call__.5} parent=39 // pred_region
        _
      $region44: #{a_call__.5} parent=39 // pred_fallthru
        _
    $region40: #{a_call__.5} parent=5 // pred_fallthru
      _
    %p787 = scmp.le.s32.totalorder 2, %s11
    // Predicated region
    $region45: #{a_call__.5} parent=5 // pred_check
      %p788 = pneg %p787
    $region46: #{a_call__.5} parent=5 // pred_check_branch
      %790 = sbr.rel (%p788) target = $region48
    $region47: #{a_call__.5} parent=5 // pred_region
      %s791 = ssub.s32 %s11, 2
      // Predicated region
      $region49: #{a_call__.5} parent=47 // pred_check
        %p792 = pneg %p150
      $region50: #{a_call__.5} parent=47 // pred_check_branch
        %794 = sbr.rel (%p792) target = $region52
      $region51: #{a_call__.5} parent=47 // pred_region
        %p795 = scmp.lt.s32.totalorder %s17, 1
        %s796 = scalar_select %p795, %s17, 1
        %s797 = smul.addr %s796, 4
        %s798 = smul.addr %s797, 4
        %s799 = scalar_lea.vmem %s5, %s798
      $region52: #{a_call__.5} parent=47 // pred_fallthru
        _
    $region48: #{a_call__.5} parent=5 // pred_fallthru
      _
  $region6: #{a_call__.5} parent=0 // loop_footer
    %s15 = sadd.s32 1, %s11
  $region7: #{a_call__.5} parent=0 // loop_footer_branch
    %10 = sbr.rel target = $region3
  $region8: #{a_call__.5} parent=0 // loop_exit
    _

</llo_original>
